<compile_context>
chip_gen: v6e
topology: v6e:2x2x1
jax: 0.10.0
libtpu: 0.0.40
codegen_flags: <defaults>
</compile_context>

<pallas_src>
import functools

import jax
import jax.numpy as jnp
from jax.experimental import pallas as pl
from jax.experimental.pallas import tpu as pltpu


def _lstm_prob_kernel(encl_ref, enct_ref, encw_ref, encs_ref,   # [B, T, 1] f32 each
                      wih0_ref, b0_ref,                          # [F, 4H] f32, [1, 4H] f32
                      wstk_ref, whh1_ref, b1_ref,                # [H, 8H] bf16, [H, 4H] bf16, [1, 4H] f32
                      wmu_ref, bmu_ref, wlv_ref, blv_ref,        # [H, Fc] f32, [1, Fc] f32 (x2)
                      mu_ref, lv_ref):                           # [B, Fc] f32 outputs
    B, T, _ = encl_ref.shape
    H = whh1_ref.shape[0]
    G = 4 * H                                                    # gate width (lanes)

    # ---- Prologue: layer-0 input projection for ALL timesteps --------------
    # xg[b,t,:] = sum_k x[b,t,k] * W_ih0[k,:] + (b_ih0 + b_hh0)
    # Four broadcast-MACs on the VPU (a K=4 MXU dot would be lane-sparse);
    # depends only on the inputs -> fully off the serial chain.
    wih0 = wih0_ref[...]                                         # [4, 4H]
    xg = (encl_ref[...] * wih0[0:1, :]
          + enct_ref[...] * wih0[1:2, :]
          + encw_ref[...] * wih0[2:3, :]
          + encs_ref[...] * wih0[3:4, :]
          + b0_ref[...])                                         # [B, T, 4H] f32

    wstk = wstk_ref[...]                                         # [H, 8H] bf16
    whh1 = whh1_ref[...]                                         # [H, 4H] bf16
    # Hoisted bias broadcast (broadcast_in_dim is not CSE'd inside the unrolled loop).
    b1b = jnp.broadcast_to(b1_ref[...], (B, G))                  # [B, 4H] f32

    def cell(gates, c):
        # Full-vreg EUP passes (sigmoid + tanh over all 4H = 128 lanes), then
        # lane-aligned H-wide quarter extracts.  PyTorch gate order (i, f, g, o).
        sig = jax.nn.sigmoid(gates)
        th = jnp.tanh(gates)
        i = sig[:, 0 * H:1 * H]
        f = sig[:, 1 * H:2 * H]
        g = th[:, 2 * H:3 * H]
        o = sig[:, 3 * H:4 * H]
        c_new = f * c + i * g
        h_new = o * jnp.tanh(c_new)
        return h_new, c_new

    def bdot(a_f32, w_bf16):
        # bf16 MXU operands, f32 accumulation: single-pass MXU issue on all
        # generations; surrounding elementwise/state math stays f32.
        return jnp.dot(a_f32.astype(jnp.bfloat16), w_bf16,
                       preferred_element_type=jnp.float32)

    # ---- Software-pipelined 2-layer recurrence ------------------------------
    # Carry g0part = h1_{t-1} @ W_hh0 (first half of the previous step's stacked
    # dot) plus c1 / h2 / c2.  Per step the *dependent* MXU work is one stacked
    # [B,H]x[H,8H] dot; the h2_{t-1} @ W_hh1 dot overlaps with layer-0 work.
    g0part = jnp.zeros((B, G), jnp.float32)                      # h1_{-1} @ W_hh0 = 0
    c1 = jnp.zeros((B, H), jnp.float32)
    h2 = jnp.zeros((B, H), jnp.float32)
    c2 = jnp.zeros((B, H), jnp.float32)

    # T is static and tiny: fully unrolled with static time indices so the xg
    # slice is a static slice and the LLO scheduler can interleave steps.
    for t in range(T):
        # Off-critical-path dot: depends only on h2_{t-1} from the previous step.
        hh1 = bdot(h2, whh1) + b1b                               # [B, 4H]
        # Layer 0, step t (input projection precomputed, hidden part carried).
        gates0 = xg[:, t, :] + g0part                            # [B, 4H]
        h1, c1 = cell(gates0, c1)
        # ONE stacked dot: lanes [0,4H) = h1_t @ W_hh0 (layer-0 hidden part for
        # step t+1), lanes [4H,8H) = h1_t @ W_ih1 (layer-1 input part, step t).
        stk = bdot(h1, wstk)                                     # [B, 8H]
        g0part = stk[:, :G]
        gates1 = stk[:, G:] + hh1
        h2, c2 = cell(gates1, c2)

    # ---- Head: Linear(H, 2*Fc) as two lane-aligned f32 dots (off the chain) --
    mu_ref[...] = (jnp.dot(h2, wmu_ref[...], preferred_element_type=jnp.float32)
                   + bmu_ref[...])
    lv_ref[...] = (jnp.dot(h2, wlv_ref[...], preferred_element_type=jnp.float32)
                   + blv_ref[...])


def week_forecast_prob_lstm(enc_l, enc_t, enc_w, enc_s, params, forecast_len):
    """enc_* : [B, Tenc, 1] float32.  Returns (mu, logvar), each [B, forecast_len]."""
    B = enc_l.shape[0]
    vmem = pl.BlockSpec(memory_space=pltpu.MemorySpace.VMEM)
    out_shape = (jax.ShapeDtypeStruct((B, forecast_len), jnp.float32),
                 jax.ShapeDtypeStruct((B, forecast_len), jnp.float32))

    # Everything stays whole-array in VMEM; no grid / pipelining needed at these
    # shapes, and no wrapper-side data-path XLA ops at all.
    # For a large production batch, add a leading "parallel" batch grid (BlockSpec
    # tiles over B) so both v7x TensorCores share the work and the per-core
    # working set stays well inside VMEM.
    mu, logvar = pl.pallas_call(
        _lstm_prob_kernel,
        out_shape=out_shape,
        in_specs=[vmem] * 13,
        out_specs=(vmem, vmem),
    )(enc_l.astype(jnp.float32), enc_t.astype(jnp.float32),
      enc_w.astype(jnp.float32), enc_s.astype(jnp.float32),
      params['wih0'], params['b0'],
      params['wstk'], params['whh1'], params['b1'],
      params['w_mu'], params['b_mu'],
      params['w_lv'], params['b_lv'])
    return mu, logvar


def make_params(key, input_features, hidden_size, forecast_len):
    """Deterministic PyTorch-style init (uniform(-1/sqrt(H), 1/sqrt(H))).

    Returns (raw, kernel):
      raw    : PyTorch-layout f32 tensors used by the pure-JAX reference.
      kernel : kernel-layout tensors (layer-0 hh and layer-1 ih stacked into one
               [H, 8H] RHS, recurrence weights cast to bf16 once, head split into
               mu/logvar halves).  Native gate order (i,f,g,o) is kept.
    """
    H = hidden_size
    ks = jax.random.split(key, 10)
    bound = 1.0 / jnp.sqrt(jnp.float32(H))

    def u(k, shape):
        return jax.random.uniform(k, shape, jnp.float32, -bound, bound)

    # Layer 0
    w_ih0 = u(ks[0], (4 * H, input_features))
    w_hh0 = u(ks[1], (4 * H, H))
    b_ih0 = u(ks[2], (4 * H,))
    b_hh0 = u(ks[3], (4 * H,))
    # Layer 1
    w_ih1 = u(ks[4], (4 * H, H))
    w_hh1 = u(ks[5], (4 * H, H))
    b_ih1 = u(ks[6], (4 * H,))
    b_hh1 = u(ks[7], (4 * H,))
    # Head: Linear(H, 2*forecast_len); bias[forecast_len:] = -3.0
    w_head = jax.random.uniform(ks[8], (2 * forecast_len, H), jnp.float32, -bound, bound)
    b_head = jax.random.uniform(ks[9], (2 * forecast_len,), jnp.float32, -bound, bound)
    b_head = b_head.at[forecast_len:].set(-3.0)

    raw = dict(w_ih0=w_ih0, w_hh0=w_hh0, b_ih0=b_ih0, b_hh0=b_hh0,
               w_ih1=w_ih1, w_hh1=w_hh1, b_ih1=b_ih1, b_hh1=b_hh1,
               w_head=w_head, b_head=b_head)

    kernel = {
        # layer-0 input projection (done in-kernel as VPU broadcast-MACs): f32.
        'wih0': w_ih0.T,                                           # [F, 4H] f32
        'b0':   (b_ih0 + b_hh0)[None, :],                          # [1, 4H] f32
        # stacked RHS sharing the same LHS h1_t: [W_hh0 | W_ih1] -> one [H, 8H]
        # bf16 dot per step.
        'wstk': jnp.concatenate([w_hh0.T, w_ih1.T],
                                axis=1).astype(jnp.bfloat16),      # [H, 8H] bf16
        'whh1': w_hh1.T.astype(jnp.bfloat16),                      # [H, 4H] bf16
        'b1':   (b_ih1 + b_hh1)[None, :],                          # [1, 4H] f32
        # head split into lane-aligned halves, kept f32 for accuracy.
        'w_mu': w_head[:forecast_len].T,                           # [H, Fc] f32
        'b_mu': b_head[:forecast_len][None, :],                    # [1, Fc] f32
        'w_lv': w_head[forecast_len:].T,                           # [H, Fc] f32
        'b_lv': b_head[forecast_len:][None, :],                    # [1, Fc] f32
    }
    return raw, kernel


def _reference_f32(enc_l, enc_t, enc_w, enc_s, raw, forecast_len):
    """Pure-JAX f32 reference in the original PyTorch layout (gate order i,f,g,o)."""
    x = jnp.concatenate([enc_l, enc_t, enc_w, enc_s], axis=-1).astype(jnp.float32)
    B, T, _ = x.shape
    H = raw['w_hh0'].shape[1]

    def cell(x_t, h, c, w_ih, w_hh, b_ih, b_hh):
        gates = x_t @ w_ih.T + h @ w_hh.T + b_ih + b_hh
        i = jax.nn.sigmoid(gates[:, 0 * H:1 * H])
        f = jax.nn.sigmoid(gates[:, 1 * H:2 * H])
        g = jnp.tanh(gates[:, 2 * H:3 * H])
        o = jax.nn.sigmoid(gates[:, 3 * H:4 * H])
        c = f * c + i * g
        h = o * jnp.tanh(c)
        return h, c

    h1 = c1 = h2 = c2 = jnp.zeros((B, H), jnp.float32)
    for t in range(T):
        h1, c1 = cell(x[:, t, :], h1, c1,
                      raw['w_ih0'], raw['w_hh0'], raw['b_ih0'], raw['b_hh0'])
        h2, c2 = cell(h1, h2, c2,
                      raw['w_ih1'], raw['w_hh1'], raw['b_ih1'], raw['b_hh1'])
    out = h2 @ raw['w_head'].T + raw['b_head']
    return out[:, :forecast_len], out[:, forecast_len:]


def _reference_matched(enc_l, enc_t, enc_w, enc_s, kp, forecast_len):
    """Pure-JAX replica of the kernel's exact numerics (same pipelining, bf16
    recurrence dot operands, f32 accumulation/elementwise, f32 head).  Used for
    a tight-tolerance check of the Mosaic lowering."""
    B, T, _ = enc_l.shape
    H = kp['whh1'].shape[0]
    G = 4 * H
    wih0 = kp['wih0']
    xg = (enc_l * wih0[0:1, :] + enc_t * wih0[1:2, :]
          + enc_w * wih0[2:3, :] + enc_s * wih0[3:4, :] + kp['b0'])   # [B, T, 4H]

    def bdot(a, w):
        return jnp.dot(a.astype(jnp.bfloat16), w, preferred_element_type=jnp.float32)

    def cell(gates, c):
        i = jax.nn.sigmoid(gates[:, 0 * H:1 * H])
        f = jax.nn.sigmoid(gates[:, 1 * H:2 * H])
        g = jnp.tanh(gates[:, 2 * H:3 * H])
        o = jax.nn.sigmoid(gates[:, 3 * H:4 * H])
        c = f * c + i * g
        return o * jnp.tanh(c), c

    g0part = jnp.zeros((B, G), jnp.float32)
    c1 = h2 = c2 = jnp.zeros((B, H), jnp.float32)
    for t in range(T):
        hh1 = bdot(h2, kp['whh1']) + kp['b1']
        h1, c1 = cell(xg[:, t, :] + g0part, c1)
        stk = bdot(h1, kp['wstk'])
        g0part = stk[:, :G]
        h2, c2 = cell(stk[:, G:] + hh1, c2)
    mu = jnp.dot(h2, kp['w_mu'], precision=jax.lax.Precision.HIGHEST) + kp['b_mu']
    lv = jnp.dot(h2, kp['w_lv'], precision=jax.lax.Precision.HIGHEST) + kp['b_lv']
    return mu, lv


if __name__ == "__main__":
    # Small shapes consistent with the module: 4 input features (load, temp,
    # work-day flag, season), B=2, Tenc=8, hidden=32, forecast_len=168.
    B, T = 2, 8
    INPUT_FEATURES = 4
    HIDDEN = 32
    FORECAST_LEN = 168

    key = jax.random.PRNGKey(0)
    k_p, k_l, k_t, k_w, k_s = jax.random.split(key, 5)

    raw_params, kernel_params = make_params(k_p, INPUT_FEATURES, HIDDEN, FORECAST_LEN)

    enc_l = jax.random.normal(k_l, (B, T, 1), jnp.float32)
    enc_t = jax.random.normal(k_t, (B, T, 1), jnp.float32)
    enc_w = (jax.random.uniform(k_w, (B, T, 1)) > 0.5).astype(jnp.float32)
    enc_s = jax.random.uniform(k_s, (B, T, 1), jnp.float32)

    fwd = jax.jit(functools.partial(week_forecast_prob_lstm,
                                    forecast_len=FORECAST_LEN))
    mu, logvar = fwd(enc_l, enc_t, enc_w, enc_s, kernel_params)
    jax.block_until_ready((mu, logvar))
    assert mu.shape == (B, FORECAST_LEN) and logvar.shape == (B, FORECAST_LEN)

    # (1) Tight check against a numerics-matched reference (same bf16 dot
    #     operands / pipelined structure) -> validates the Mosaic lowering.
    mu_m, lv_m = _reference_matched(enc_l, enc_t, enc_w, enc_s,
                                    kernel_params, FORECAST_LEN)
    assert jnp.allclose(mu, mu_m, atol=5e-3, rtol=5e-3)
    assert jnp.allclose(logvar, lv_m, atol=5e-3, rtol=5e-3)

    # (2) Check against the full-f32 PyTorch-layout reference -> validates the
    #     weight stacking / pipelining / bias handling end-to-end.  Tolerance is
    #     loosened vs. the earlier 1e-4 because the recurrence MXU operands are
    #     bf16 (per the perf review); observed error is ~1e-3, bound << 2e-2.
    mu_ref, lv_ref = _reference_f32(enc_l, enc_t, enc_w, enc_s,
                                    raw_params, FORECAST_LEN)
    assert jnp.allclose(mu, mu_ref, atol=2e-2, rtol=2e-2)
    assert jnp.allclose(logvar, lv_ref, atol=2e-2, rtol=2e-2)

    print("KERNEL_OK")
</pallas_src>

<mosaic_0001>
module attributes {stable_mosaic.version = 11 : i64} {
  func.func @_lstm_prob_kernel(%arg0: memref<2x8x1xf32, #tpu.memory_space<vmem>>, %arg1: memref<2x8x1xf32, #tpu.memory_space<vmem>>, %arg2: memref<2x8x1xf32, #tpu.memory_space<vmem>>, %arg3: memref<2x8x1xf32, #tpu.memory_space<vmem>>, %arg4: memref<4x128xf32, #tpu.memory_space<vmem>>, %arg5: memref<1x128xf32, #tpu.memory_space<vmem>>, %arg6: memref<32x256xbf16, #tpu.memory_space<vmem>>, %arg7: memref<32x128xbf16, #tpu.memory_space<vmem>>, %arg8: memref<1x128xf32, #tpu.memory_space<vmem>>, %arg9: memref<32x168xf32, #tpu.memory_space<vmem>>, %arg10: memref<1x168xf32, #tpu.memory_space<vmem>>, %arg11: memref<32x168xf32, #tpu.memory_space<vmem>>, %arg12: memref<1x168xf32, #tpu.memory_space<vmem>>, %arg13: memref<2x168xf32, #tpu.memory_space<vmem>>, %arg14: memref<2x168xf32, #tpu.memory_space<vmem>>) attributes {dimension_semantics = [], scalar_prefetch = 0 : i64, scratch_operands = 0 : i64, tpu.core_type = #tpu.core_type<tc>} {
    %c0 = arith.constant 0 : index
    %c0_0 = arith.constant 0 : index
    %0 = vector.load %arg4[%c0, %c0_0] : memref<4x128xf32, #tpu.memory_space<vmem>>, vector<4x128xf32>
    %c0_1 = arith.constant 0 : index
    %c0_2 = arith.constant 0 : index
    %c0_3 = arith.constant 0 : index
    %1 = vector.load %arg0[%c0_1, %c0_2, %c0_3] : memref<2x8x1xf32, #tpu.memory_space<vmem>>, vector<2x8x1xf32>
    %2 = vector.extract_strided_slice %0 {offsets = [0, 0], sizes = [1, 128], strides = [1, 1]} : vector<4x128xf32> to vector<1x128xf32>
    %3 = vector.shape_cast %2 : vector<1x128xf32> to vector<1x1x128xf32>
    %4 = vector.broadcast %1 : vector<2x8x1xf32> to vector<2x8x128xf32>
    %5 = vector.broadcast %3 : vector<1x1x128xf32> to vector<2x8x128xf32>
    %6 = arith.mulf %4, %5 : vector<2x8x128xf32>
    %c0_4 = arith.constant 0 : index
    %c0_5 = arith.constant 0 : index
    %c0_6 = arith.constant 0 : index
    %7 = vector.load %arg1[%c0_4, %c0_5, %c0_6] : memref<2x8x1xf32, #tpu.memory_space<vmem>>, vector<2x8x1xf32>
    %8 = vector.extract_strided_slice %0 {offsets = [1, 0], sizes = [1, 128], strides = [1, 1]} : vector<4x128xf32> to vector<1x128xf32>
    %9 = vector.shape_cast %8 : vector<1x128xf32> to vector<1x1x128xf32>
    %10 = vector.broadcast %7 : vector<2x8x1xf32> to vector<2x8x128xf32>
    %11 = vector.broadcast %9 : vector<1x1x128xf32> to vector<2x8x128xf32>
    %12 = arith.mulf %10, %11 : vector<2x8x128xf32>
    %13 = arith.addf %6, %12 : vector<2x8x128xf32>
    %c0_7 = arith.constant 0 : index
    %c0_8 = arith.constant 0 : index
    %c0_9 = arith.constant 0 : index
    %14 = vector.load %arg2[%c0_7, %c0_8, %c0_9] : memref<2x8x1xf32, #tpu.memory_space<vmem>>, vector<2x8x1xf32>
    %15 = vector.extract_strided_slice %0 {offsets = [2, 0], sizes = [1, 128], strides = [1, 1]} : vector<4x128xf32> to vector<1x128xf32>
    %16 = vector.shape_cast %15 : vector<1x128xf32> to vector<1x1x128xf32>
    %17 = vector.broadcast %14 : vector<2x8x1xf32> to vector<2x8x128xf32>
    %18 = vector.broadcast %16 : vector<1x1x128xf32> to vector<2x8x128xf32>
    %19 = arith.mulf %17, %18 : vector<2x8x128xf32>
    %20 = arith.addf %13, %19 : vector<2x8x128xf32>
    %c0_10 = arith.constant 0 : index
    %c0_11 = arith.constant 0 : index
    %c0_12 = arith.constant 0 : index
    %21 = vector.load %arg3[%c0_10, %c0_11, %c0_12] : memref<2x8x1xf32, #tpu.memory_space<vmem>>, vector<2x8x1xf32>
    %22 = vector.extract_strided_slice %0 {offsets = [3, 0], sizes = [1, 128], strides = [1, 1]} : vector<4x128xf32> to vector<1x128xf32>
    %23 = vector.shape_cast %22 : vector<1x128xf32> to vector<1x1x128xf32>
    %24 = vector.broadcast %21 : vector<2x8x1xf32> to vector<2x8x128xf32>
    %25 = vector.broadcast %23 : vector<1x1x128xf32> to vector<2x8x128xf32>
    %26 = arith.mulf %24, %25 : vector<2x8x128xf32>
    %27 = arith.addf %20, %26 : vector<2x8x128xf32>
    %c0_13 = arith.constant 0 : index
    %c0_14 = arith.constant 0 : index
    %28 = vector.load %arg5[%c0_13, %c0_14] : memref<1x128xf32, #tpu.memory_space<vmem>>, vector<1x128xf32>
    %29 = vector.shape_cast %28 : vector<1x128xf32> to vector<1x1x128xf32>
    %30 = vector.broadcast %29 : vector<1x1x128xf32> to vector<2x8x128xf32>
    %31 = arith.addf %27, %30 : vector<2x8x128xf32>
    %c0_15 = arith.constant 0 : index
    %c0_16 = arith.constant 0 : index
    %32 = vector.load %arg6[%c0_15, %c0_16] : memref<32x256xbf16, #tpu.memory_space<vmem>>, vector<32x256xbf16>
    %c0_17 = arith.constant 0 : index
    %c0_18 = arith.constant 0 : index
    %33 = vector.load %arg7[%c0_17, %c0_18] : memref<32x128xbf16, #tpu.memory_space<vmem>>, vector<32x128xbf16>
    %c0_19 = arith.constant 0 : index
    %c0_20 = arith.constant 0 : index
    %34 = vector.load %arg8[%c0_19, %c0_20] : memref<1x128xf32, #tpu.memory_space<vmem>>, vector<1x128xf32>
    %35 = vector.shape_cast %34 : vector<1x128xf32> to vector<1x128xf32>
    %36 = vector.broadcast %35 : vector<1x128xf32> to vector<2x128xf32>
    %cst = arith.constant 0.000000e+00 : f32
    %37 = vector.broadcast %cst : f32 to vector<2x128xf32>
    %cst_21 = arith.constant 0.000000e+00 : f32
    %38 = vector.broadcast %cst_21 : f32 to vector<2x32xf32>
    %cst_22 = arith.constant 0.000000e+00 : f32
    %39 = vector.broadcast %cst_22 : f32 to vector<2x32xf32>
    %cst_23 = arith.constant 0.000000e+00 : f32
    %40 = vector.broadcast %cst_23 : f32 to vector<2x32xf32>
    %41 = arith.truncf %39 : vector<2x32xf32> to vector<2x32xbf16>
    %cst_24 = arith.constant dense<0.000000e+00> : vector<2x128xf32>
    %42 = tpu.matmul %41, %33, %cst_24 {dimension_numbers = #tpu.dot_dimension_numbers<[1], [0], [0], [1], [0, 0, 1, 1], [], []>} : vector<2x32xbf16>, vector<32x128xbf16>, vector<2x128xf32> -> vector<2x128xf32>
    %43 = arith.addf %42, %36 : vector<2x128xf32>
    %44 = vector.extract_strided_slice %31 {offsets = [0, 0, 0], sizes = [2, 1, 128], strides = [1, 1, 1]} : vector<2x8x128xf32> to vector<2x1x128xf32>
    %45 = vector.shape_cast %44 : vector<2x1x128xf32> to vector<2x128xf32>
    %46 = arith.addf %45, %37 : vector<2x128xf32>
    %47 = arith.negf %46 : vector<2x128xf32>
    %48 = math.exp %47 : vector<2x128xf32>
    %cst_25 = arith.constant 1.000000e+00 : f32
    %49 = vector.broadcast %cst_25 : f32 to vector<2x128xf32>
    %50 = arith.addf %49, %48 : vector<2x128xf32>
    %51 = arith.divf %49, %50 : vector<2x128xf32>
    %52 = math.tanh %46 : vector<2x128xf32>
    %53 = vector.extract_strided_slice %51 {offsets = [0, 0], sizes = [2, 32], strides = [1, 1]} : vector<2x128xf32> to vector<2x32xf32>
    %54 = vector.extract_strided_slice %51 {offsets = [0, 32], sizes = [2, 32], strides = [1, 1]} : vector<2x128xf32> to vector<2x32xf32>
    %55 = vector.extract_strided_slice %52 {offsets = [0, 64], sizes = [2, 32], strides = [1, 1]} : vector<2x128xf32> to vector<2x32xf32>
    %56 = vector.extract_strided_slice %51 {offsets = [0, 96], sizes = [2, 32], strides = [1, 1]} : vector<2x128xf32> to vector<2x32xf32>
    %57 = arith.mulf %54, %38 : vector<2x32xf32>
    %58 = arith.mulf %53, %55 : vector<2x32xf32>
    %59 = arith.addf %57, %58 : vector<2x32xf32>
    %60 = math.tanh %59 : vector<2x32xf32>
    %61 = arith.mulf %56, %60 : vector<2x32xf32>
    %62 = arith.truncf %61 : vector<2x32xf32> to vector<2x32xbf16>
    %cst_26 = arith.constant dense<0.000000e+00> : vector<2x256xf32>
    %63 = tpu.matmul %62, %32, %cst_26 {dimension_numbers = #tpu.dot_dimension_numbers<[1], [0], [0], [1], [0, 0, 1, 1], [], []>} : vector<2x32xbf16>, vector<32x256xbf16>, vector<2x256xf32> -> vector<2x256xf32>
    %64 = vector.extract_strided_slice %63 {offsets = [0, 0], sizes = [2, 128], strides = [1, 1]} : vector<2x256xf32> to vector<2x128xf32>
    %65 = vector.extract_strided_slice %63 {offsets = [0, 128], sizes = [2, 128], strides = [1, 1]} : vector<2x256xf32> to vector<2x128xf32>
    %66 = arith.addf %65, %43 : vector<2x128xf32>
    %67 = arith.negf %66 : vector<2x128xf32>
    %68 = math.exp %67 : vector<2x128xf32>
    %cst_27 = arith.constant 1.000000e+00 : f32
    %69 = vector.broadcast %cst_27 : f32 to vector<2x128xf32>
    %70 = arith.addf %69, %68 : vector<2x128xf32>
    %71 = arith.divf %69, %70 : vector<2x128xf32>
    %72 = math.tanh %66 : vector<2x128xf32>
    %73 = vector.extract_strided_slice %71 {offsets = [0, 0], sizes = [2, 32], strides = [1, 1]} : vector<2x128xf32> to vector<2x32xf32>
    %74 = vector.extract_strided_slice %71 {offsets = [0, 32], sizes = [2, 32], strides = [1, 1]} : vector<2x128xf32> to vector<2x32xf32>
    %75 = vector.extract_strided_slice %72 {offsets = [0, 64], sizes = [2, 32], strides = [1, 1]} : vector<2x128xf32> to vector<2x32xf32>
    %76 = vector.extract_strided_slice %71 {offsets = [0, 96], sizes = [2, 32], strides = [1, 1]} : vector<2x128xf32> to vector<2x32xf32>
    %77 = arith.mulf %74, %40 : vector<2x32xf32>
    %78 = arith.mulf %73, %75 : vector<2x32xf32>
    %79 = arith.addf %77, %78 : vector<2x32xf32>
    %80 = math.tanh %79 : vector<2x32xf32>
    %81 = arith.mulf %76, %80 : vector<2x32xf32>
    %82 = arith.truncf %81 : vector<2x32xf32> to vector<2x32xbf16>
    %cst_28 = arith.constant dense<0.000000e+00> : vector<2x128xf32>
    %83 = tpu.matmul %82, %33, %cst_28 {dimension_numbers = #tpu.dot_dimension_numbers<[1], [0], [0], [1], [0, 0, 1, 1], [], []>} : vector<2x32xbf16>, vector<32x128xbf16>, vector<2x128xf32> -> vector<2x128xf32>
    %84 = arith.addf %83, %36 : vector<2x128xf32>
    %85 = vector.extract_strided_slice %31 {offsets = [0, 1, 0], sizes = [2, 1, 128], strides = [1, 1, 1]} : vector<2x8x128xf32> to vector<2x1x128xf32>
    %86 = vector.shape_cast %85 : vector<2x1x128xf32> to vector<2x128xf32>
    %87 = arith.addf %86, %64 : vector<2x128xf32>
    %88 = arith.negf %87 : vector<2x128xf32>
    %89 = math.exp %88 : vector<2x128xf32>
    %cst_29 = arith.constant 1.000000e+00 : f32
    %90 = vector.broadcast %cst_29 : f32 to vector<2x128xf32>
    %91 = arith.addf %90, %89 : vector<2x128xf32>
    %92 = arith.divf %90, %91 : vector<2x128xf32>
    %93 = math.tanh %87 : vector<2x128xf32>
    %94 = vector.extract_strided_slice %92 {offsets = [0, 0], sizes = [2, 32], strides = [1, 1]} : vector<2x128xf32> to vector<2x32xf32>
    %95 = vector.extract_strided_slice %92 {offsets = [0, 32], sizes = [2, 32], strides = [1, 1]} : vector<2x128xf32> to vector<2x32xf32>
    %96 = vector.extract_strided_slice %93 {offsets = [0, 64], sizes = [2, 32], strides = [1, 1]} : vector<2x128xf32> to vector<2x32xf32>
    %97 = vector.extract_strided_slice %92 {offsets = [0, 96], sizes = [2, 32], strides = [1, 1]} : vector<2x128xf32> to vector<2x32xf32>
    %98 = arith.mulf %95, %59 : vector<2x32xf32>
    %99 = arith.mulf %94, %96 : vector<2x32xf32>
    %100 = arith.addf %98, %99 : vector<2x32xf32>
    %101 = math.tanh %100 : vector<2x32xf32>
    %102 = arith.mulf %97, %101 : vector<2x32xf32>
    %103 = arith.truncf %102 : vector<2x32xf32> to vector<2x32xbf16>
    %cst_30 = arith.constant dense<0.000000e+00> : vector<2x256xf32>
    %104 = tpu.matmul %103, %32, %cst_30 {dimension_numbers = #tpu.dot_dimension_numbers<[1], [0], [0], [1], [0, 0, 1, 1], [], []>} : vector<2x32xbf16>, vector<32x256xbf16>, vector<2x256xf32> -> vector<2x256xf32>
    %105 = vector.extract_strided_slice %104 {offsets = [0, 0], sizes = [2, 128], strides = [1, 1]} : vector<2x256xf32> to vector<2x128xf32>
    %106 = vector.extract_strided_slice %104 {offsets = [0, 128], sizes = [2, 128], strides = [1, 1]} : vector<2x256xf32> to vector<2x128xf32>
    %107 = arith.addf %106, %84 : vector<2x128xf32>
    %108 = arith.negf %107 : vector<2x128xf32>
    %109 = math.exp %108 : vector<2x128xf32>
    %cst_31 = arith.constant 1.000000e+00 : f32
    %110 = vector.broadcast %cst_31 : f32 to vector<2x128xf32>
    %111 = arith.addf %110, %109 : vector<2x128xf32>
    %112 = arith.divf %110, %111 : vector<2x128xf32>
    %113 = math.tanh %107 : vector<2x128xf32>
    %114 = vector.extract_strided_slice %112 {offsets = [0, 0], sizes = [2, 32], strides = [1, 1]} : vector<2x128xf32> to vector<2x32xf32>
    %115 = vector.extract_strided_slice %112 {offsets = [0, 32], sizes = [2, 32], strides = [1, 1]} : vector<2x128xf32> to vector<2x32xf32>
    %116 = vector.extract_strided_slice %113 {offsets = [0, 64], sizes = [2, 32], strides = [1, 1]} : vector<2x128xf32> to vector<2x32xf32>
    %117 = vector.extract_strided_slice %112 {offsets = [0, 96], sizes = [2, 32], strides = [1, 1]} : vector<2x128xf32> to vector<2x32xf32>
    %118 = arith.mulf %115, %79 : vector<2x32xf32>
    %119 = arith.mulf %114, %116 : vector<2x32xf32>
    %120 = arith.addf %118, %119 : vector<2x32xf32>
    %121 = math.tanh %120 : vector<2x32xf32>
    %122 = arith.mulf %117, %121 : vector<2x32xf32>
    %123 = arith.truncf %122 : vector<2x32xf32> to vector<2x32xbf16>
    %cst_32 = arith.constant dense<0.000000e+00> : vector<2x128xf32>
    %124 = tpu.matmul %123, %33, %cst_32 {dimension_numbers = #tpu.dot_dimension_numbers<[1], [0], [0], [1], [0, 0, 1, 1], [], []>} : vector<2x32xbf16>, vector<32x128xbf16>, vector<2x128xf32> -> vector<2x128xf32>
    %125 = arith.addf %124, %36 : vector<2x128xf32>
    %126 = vector.extract_strided_slice %31 {offsets = [0, 2, 0], sizes = [2, 1, 128], strides = [1, 1, 1]} : vector<2x8x128xf32> to vector<2x1x128xf32>
    %127 = vector.shape_cast %126 : vector<2x1x128xf32> to vector<2x128xf32>
    %128 = arith.addf %127, %105 : vector<2x128xf32>
    %129 = arith.negf %128 : vector<2x128xf32>
    %130 = math.exp %129 : vector<2x128xf32>
    %cst_33 = arith.constant 1.000000e+00 : f32
    %131 = vector.broadcast %cst_33 : f32 to vector<2x128xf32>
    %132 = arith.addf %131, %130 : vector<2x128xf32>
    %133 = arith.divf %131, %132 : vector<2x128xf32>
    %134 = math.tanh %128 : vector<2x128xf32>
    %135 = vector.extract_strided_slice %133 {offsets = [0, 0], sizes = [2, 32], strides = [1, 1]} : vector<2x128xf32> to vector<2x32xf32>
    %136 = vector.extract_strided_slice %133 {offsets = [0, 32], sizes = [2, 32], strides = [1, 1]} : vector<2x128xf32> to vector<2x32xf32>
    %137 = vector.extract_strided_slice %134 {offsets = [0, 64], sizes = [2, 32], strides = [1, 1]} : vector<2x128xf32> to vector<2x32xf32>
    %138 = vector.extract_strided_slice %133 {offsets = [0, 96], sizes = [2, 32], strides = [1, 1]} : vector<2x128xf32> to vector<2x32xf32>
    %139 = arith.mulf %136, %100 : vector<2x32xf32>
    %140 = arith.mulf %135, %137 : vector<2x32xf32>
    %141 = arith.addf %139, %140 : vector<2x32xf32>
    %142 = math.tanh %141 : vector<2x32xf32>
    %143 = arith.mulf %138, %142 : vector<2x32xf32>
    %144 = arith.truncf %143 : vector<2x32xf32> to vector<2x32xbf16>
    %cst_34 = arith.constant dense<0.000000e+00> : vector<2x256xf32>
    %145 = tpu.matmul %144, %32, %cst_34 {dimension_numbers = #tpu.dot_dimension_numbers<[1], [0], [0], [1], [0, 0, 1, 1], [], []>} : vector<2x32xbf16>, vector<32x256xbf16>, vector<2x256xf32> -> vector<2x256xf32>
    %146 = vector.extract_strided_slice %145 {offsets = [0, 0], sizes = [2, 128], strides = [1, 1]} : vector<2x256xf32> to vector<2x128xf32>
    %147 = vector.extract_strided_slice %145 {offsets = [0, 128], sizes = [2, 128], strides = [1, 1]} : vector<2x256xf32> to vector<2x128xf32>
    %148 = arith.addf %147, %125 : vector<2x128xf32>
    %149 = arith.negf %148 : vector<2x128xf32>
    %150 = math.exp %149 : vector<2x128xf32>
    %cst_35 = arith.constant 1.000000e+00 : f32
    %151 = vector.broadcast %cst_35 : f32 to vector<2x128xf32>
    %152 = arith.addf %151, %150 : vector<2x128xf32>
    %153 = arith.divf %151, %152 : vector<2x128xf32>
    %154 = math.tanh %148 : vector<2x128xf32>
    %155 = vector.extract_strided_slice %153 {offsets = [0, 0], sizes = [2, 32], strides = [1, 1]} : vector<2x128xf32> to vector<2x32xf32>
    %156 = vector.extract_strided_slice %153 {offsets = [0, 32], sizes = [2, 32], strides = [1, 1]} : vector<2x128xf32> to vector<2x32xf32>
    %157 = vector.extract_strided_slice %154 {offsets = [0, 64], sizes = [2, 32], strides = [1, 1]} : vector<2x128xf32> to vector<2x32xf32>
    %158 = vector.extract_strided_slice %153 {offsets = [0, 96], sizes = [2, 32], strides = [1, 1]} : vector<2x128xf32> to vector<2x32xf32>
    %159 = arith.mulf %156, %120 : vector<2x32xf32>
    %160 = arith.mulf %155, %157 : vector<2x32xf32>
    %161 = arith.addf %159, %160 : vector<2x32xf32>
    %162 = math.tanh %161 : vector<2x32xf32>
    %163 = arith.mulf %158, %162 : vector<2x32xf32>
    %164 = arith.truncf %163 : vector<2x32xf32> to vector<2x32xbf16>
    %cst_36 = arith.constant dense<0.000000e+00> : vector<2x128xf32>
    %165 = tpu.matmul %164, %33, %cst_36 {dimension_numbers = #tpu.dot_dimension_numbers<[1], [0], [0], [1], [0, 0, 1, 1], [], []>} : vector<2x32xbf16>, vector<32x128xbf16>, vector<2x128xf32> -> vector<2x128xf32>
    %166 = arith.addf %165, %36 : vector<2x128xf32>
    %167 = vector.extract_strided_slice %31 {offsets = [0, 3, 0], sizes = [2, 1, 128], strides = [1, 1, 1]} : vector<2x8x128xf32> to vector<2x1x128xf32>
    %168 = vector.shape_cast %167 : vector<2x1x128xf32> to vector<2x128xf32>
    %169 = arith.addf %168, %146 : vector<2x128xf32>
    %170 = arith.negf %169 : vector<2x128xf32>
    %171 = math.exp %170 : vector<2x128xf32>
    %cst_37 = arith.constant 1.000000e+00 : f32
    %172 = vector.broadcast %cst_37 : f32 to vector<2x128xf32>
    %173 = arith.addf %172, %171 : vector<2x128xf32>
    %174 = arith.divf %172, %173 : vector<2x128xf32>
    %175 = math.tanh %169 : vector<2x128xf32>
    %176 = vector.extract_strided_slice %174 {offsets = [0, 0], sizes = [2, 32], strides = [1, 1]} : vector<2x128xf32> to vector<2x32xf32>
    %177 = vector.extract_strided_slice %174 {offsets = [0, 32], sizes = [2, 32], strides = [1, 1]} : vector<2x128xf32> to vector<2x32xf32>
    %178 = vector.extract_strided_slice %175 {offsets = [0, 64], sizes = [2, 32], strides = [1, 1]} : vector<2x128xf32> to vector<2x32xf32>
    %179 = vector.extract_strided_slice %174 {offsets = [0, 96], sizes = [2, 32], strides = [1, 1]} : vector<2x128xf32> to vector<2x32xf32>
    %180 = arith.mulf %177, %141 : vector<2x32xf32>
    %181 = arith.mulf %176, %178 : vector<2x32xf32>
    %182 = arith.addf %180, %181 : vector<2x32xf32>
    %183 = math.tanh %182 : vector<2x32xf32>
    %184 = arith.mulf %179, %183 : vector<2x32xf32>
    %185 = arith.truncf %184 : vector<2x32xf32> to vector<2x32xbf16>
    %cst_38 = arith.constant dense<0.000000e+00> : vector<2x256xf32>
    %186 = tpu.matmul %185, %32, %cst_38 {dimension_numbers = #tpu.dot_dimension_numbers<[1], [0], [0], [1], [0, 0, 1, 1], [], []>} : vector<2x32xbf16>, vector<32x256xbf16>, vector<2x256xf32> -> vector<2x256xf32>
    %187 = vector.extract_strided_slice %186 {offsets = [0, 0], sizes = [2, 128], strides = [1, 1]} : vector<2x256xf32> to vector<2x128xf32>
    %188 = vector.extract_strided_slice %186 {offsets = [0, 128], sizes = [2, 128], strides = [1, 1]} : vector<2x256xf32> to vector<2x128xf32>
    %189 = arith.addf %188, %166 : vector<2x128xf32>
    %190 = arith.negf %189 : vector<2x128xf32>
    %191 = math.exp %190 : vector<2x128xf32>
    %cst_39 = arith.constant 1.000000e+00 : f32
    %192 = vector.broadcast %cst_39 : f32 to vector<2x128xf32>
    %193 = arith.addf %192, %191 : vector<2x128xf32>
    %194 = arith.divf %192, %193 : vector<2x128xf32>
    %195 = math.tanh %189 : vector<2x128xf32>
    %196 = vector.extract_strided_slice %194 {offsets = [0, 0], sizes = [2, 32], strides = [1, 1]} : vector<2x128xf32> to vector<2x32xf32>
    %197 = vector.extract_strided_slice %194 {offsets = [0, 32], sizes = [2, 32], strides = [1, 1]} : vector<2x128xf32> to vector<2x32xf32>
    %198 = vector.extract_strided_slice %195 {offsets = [0, 64], sizes = [2, 32], strides = [1, 1]} : vector<2x128xf32> to vector<2x32xf32>
    %199 = vector.extract_strided_slice %194 {offsets = [0, 96], sizes = [2, 32], strides = [1, 1]} : vector<2x128xf32> to vector<2x32xf32>
    %200 = arith.mulf %197, %161 : vector<2x32xf32>
    %201 = arith.mulf %196, %198 : vector<2x32xf32>
    %202 = arith.addf %200, %201 : vector<2x32xf32>
    %203 = math.tanh %202 : vector<2x32xf32>
    %204 = arith.mulf %199, %203 : vector<2x32xf32>
    %205 = arith.truncf %204 : vector<2x32xf32> to vector<2x32xbf16>
    %cst_40 = arith.constant dense<0.000000e+00> : vector<2x128xf32>
    %206 = tpu.matmul %205, %33, %cst_40 {dimension_numbers = #tpu.dot_dimension_numbers<[1], [0], [0], [1], [0, 0, 1, 1], [], []>} : vector<2x32xbf16>, vector<32x128xbf16>, vector<2x128xf32> -> vector<2x128xf32>
    %207 = arith.addf %206, %36 : vector<2x128xf32>
    %208 = vector.extract_strided_slice %31 {offsets = [0, 4, 0], sizes = [2, 1, 128], strides = [1, 1, 1]} : vector<2x8x128xf32> to vector<2x1x128xf32>
    %209 = vector.shape_cast %208 : vector<2x1x128xf32> to vector<2x128xf32>
    %210 = arith.addf %209, %187 : vector<2x128xf32>
    %211 = arith.negf %210 : vector<2x128xf32>
    %212 = math.exp %211 : vector<2x128xf32>
    %cst_41 = arith.constant 1.000000e+00 : f32
    %213 = vector.broadcast %cst_41 : f32 to vector<2x128xf32>
    %214 = arith.addf %213, %212 : vector<2x128xf32>
    %215 = arith.divf %213, %214 : vector<2x128xf32>
    %216 = math.tanh %210 : vector<2x128xf32>
    %217 = vector.extract_strided_slice %215 {offsets = [0, 0], sizes = [2, 32], strides = [1, 1]} : vector<2x128xf32> to vector<2x32xf32>
    %218 = vector.extract_strided_slice %215 {offsets = [0, 32], sizes = [2, 32], strides = [1, 1]} : vector<2x128xf32> to vector<2x32xf32>
    %219 = vector.extract_strided_slice %216 {offsets = [0, 64], sizes = [2, 32], strides = [1, 1]} : vector<2x128xf32> to vector<2x32xf32>
    %220 = vector.extract_strided_slice %215 {offsets = [0, 96], sizes = [2, 32], strides = [1, 1]} : vector<2x128xf32> to vector<2x32xf32>
    %221 = arith.mulf %218, %182 : vector<2x32xf32>
    %222 = arith.mulf %217, %219 : vector<2x32xf32>
    %223 = arith.addf %221, %222 : vector<2x32xf32>
    %224 = math.tanh %223 : vector<2x32xf32>
    %225 = arith.mulf %220, %224 : vector<2x32xf32>
    %226 = arith.truncf %225 : vector<2x32xf32> to vector<2x32xbf16>
    %cst_42 = arith.constant dense<0.000000e+00> : vector<2x256xf32>
    %227 = tpu.matmul %226, %32, %cst_42 {dimension_numbers = #tpu.dot_dimension_numbers<[1], [0], [0], [1], [0, 0, 1, 1], [], []>} : vector<2x32xbf16>, vector<32x256xbf16>, vector<2x256xf32> -> vector<2x256xf32>
    %228 = vector.extract_strided_slice %227 {offsets = [0, 0], sizes = [2, 128], strides = [1, 1]} : vector<2x256xf32> to vector<2x128xf32>
    %229 = vector.extract_strided_slice %227 {offsets = [0, 128], sizes = [2, 128], strides = [1, 1]} : vector<2x256xf32> to vector<2x128xf32>
    %230 = arith.addf %229, %207 : vector<2x128xf32>
    %231 = arith.negf %230 : vector<2x128xf32>
    %232 = math.exp %231 : vector<2x128xf32>
    %cst_43 = arith.constant 1.000000e+00 : f32
    %233 = vector.broadcast %cst_43 : f32 to vector<2x128xf32>
    %234 = arith.addf %233, %232 : vector<2x128xf32>
    %235 = arith.divf %233, %234 : vector<2x128xf32>
    %236 = math.tanh %230 : vector<2x128xf32>
    %237 = vector.extract_strided_slice %235 {offsets = [0, 0], sizes = [2, 32], strides = [1, 1]} : vector<2x128xf32> to vector<2x32xf32>
    %238 = vector.extract_strided_slice %235 {offsets = [0, 32], sizes = [2, 32], strides = [1, 1]} : vector<2x128xf32> to vector<2x32xf32>
    %239 = vector.extract_strided_slice %236 {offsets = [0, 64], sizes = [2, 32], strides = [1, 1]} : vector<2x128xf32> to vector<2x32xf32>
    %240 = vector.extract_strided_slice %235 {offsets = [0, 96], sizes = [2, 32], strides = [1, 1]} : vector<2x128xf32> to vector<2x32xf32>
    %241 = arith.mulf %238, %202 : vector<2x32xf32>
    %242 = arith.mulf %237, %239 : vector<2x32xf32>
    %243 = arith.addf %241, %242 : vector<2x32xf32>
    %244 = math.tanh %243 : vector<2x32xf32>
    %245 = arith.mulf %240, %244 : vector<2x32xf32>
    %246 = arith.truncf %245 : vector<2x32xf32> to vector<2x32xbf16>
    %cst_44 = arith.constant dense<0.000000e+00> : vector<2x128xf32>
    %247 = tpu.matmul %246, %33, %cst_44 {dimension_numbers = #tpu.dot_dimension_numbers<[1], [0], [0], [1], [0, 0, 1, 1], [], []>} : vector<2x32xbf16>, vector<32x128xbf16>, vector<2x128xf32> -> vector<2x128xf32>
    %248 = arith.addf %247, %36 : vector<2x128xf32>
    %249 = vector.extract_strided_slice %31 {offsets = [0, 5, 0], sizes = [2, 1, 128], strides = [1, 1, 1]} : vector<2x8x128xf32> to vector<2x1x128xf32>
    %250 = vector.shape_cast %249 : vector<2x1x128xf32> to vector<2x128xf32>
    %251 = arith.addf %250, %228 : vector<2x128xf32>
    %252 = arith.negf %251 : vector<2x128xf32>
    %253 = math.exp %252 : vector<2x128xf32>
    %cst_45 = arith.constant 1.000000e+00 : f32
    %254 = vector.broadcast %cst_45 : f32 to vector<2x128xf32>
    %255 = arith.addf %254, %253 : vector<2x128xf32>
    %256 = arith.divf %254, %255 : vector<2x128xf32>
    %257 = math.tanh %251 : vector<2x128xf32>
    %258 = vector.extract_strided_slice %256 {offsets = [0, 0], sizes = [2, 32], strides = [1, 1]} : vector<2x128xf32> to vector<2x32xf32>
    %259 = vector.extract_strided_slice %256 {offsets = [0, 32], sizes = [2, 32], strides = [1, 1]} : vector<2x128xf32> to vector<2x32xf32>
    %260 = vector.extract_strided_slice %257 {offsets = [0, 64], sizes = [2, 32], strides = [1, 1]} : vector<2x128xf32> to vector<2x32xf32>
    %261 = vector.extract_strided_slice %256 {offsets = [0, 96], sizes = [2, 32], strides = [1, 1]} : vector<2x128xf32> to vector<2x32xf32>
    %262 = arith.mulf %259, %223 : vector<2x32xf32>
    %263 = arith.mulf %258, %260 : vector<2x32xf32>
    %264 = arith.addf %262, %263 : vector<2x32xf32>
    %265 = math.tanh %264 : vector<2x32xf32>
    %266 = arith.mulf %261, %265 : vector<2x32xf32>
    %267 = arith.truncf %266 : vector<2x32xf32> to vector<2x32xbf16>
    %cst_46 = arith.constant dense<0.000000e+00> : vector<2x256xf32>
    %268 = tpu.matmul %267, %32, %cst_46 {dimension_numbers = #tpu.dot_dimension_numbers<[1], [0], [0], [1], [0, 0, 1, 1], [], []>} : vector<2x32xbf16>, vector<32x256xbf16>, vector<2x256xf32> -> vector<2x256xf32>
    %269 = vector.extract_strided_slice %268 {offsets = [0, 0], sizes = [2, 128], strides = [1, 1]} : vector<2x256xf32> to vector<2x128xf32>
    %270 = vector.extract_strided_slice %268 {offsets = [0, 128], sizes = [2, 128], strides = [1, 1]} : vector<2x256xf32> to vector<2x128xf32>
    %271 = arith.addf %270, %248 : vector<2x128xf32>
    %272 = arith.negf %271 : vector<2x128xf32>
    %273 = math.exp %272 : vector<2x128xf32>
    %cst_47 = arith.constant 1.000000e+00 : f32
    %274 = vector.broadcast %cst_47 : f32 to vector<2x128xf32>
    %275 = arith.addf %274, %273 : vector<2x128xf32>
    %276 = arith.divf %274, %275 : vector<2x128xf32>
    %277 = math.tanh %271 : vector<2x128xf32>
    %278 = vector.extract_strided_slice %276 {offsets = [0, 0], sizes = [2, 32], strides = [1, 1]} : vector<2x128xf32> to vector<2x32xf32>
    %279 = vector.extract_strided_slice %276 {offsets = [0, 32], sizes = [2, 32], strides = [1, 1]} : vector<2x128xf32> to vector<2x32xf32>
    %280 = vector.extract_strided_slice %277 {offsets = [0, 64], sizes = [2, 32], strides = [1, 1]} : vector<2x128xf32> to vector<2x32xf32>
    %281 = vector.extract_strided_slice %276 {offsets = [0, 96], sizes = [2, 32], strides = [1, 1]} : vector<2x128xf32> to vector<2x32xf32>
    %282 = arith.mulf %279, %243 : vector<2x32xf32>
    %283 = arith.mulf %278, %280 : vector<2x32xf32>
    %284 = arith.addf %282, %283 : vector<2x32xf32>
    %285 = math.tanh %284 : vector<2x32xf32>
    %286 = arith.mulf %281, %285 : vector<2x32xf32>
    %287 = arith.truncf %286 : vector<2x32xf32> to vector<2x32xbf16>
    %cst_48 = arith.constant dense<0.000000e+00> : vector<2x128xf32>
    %288 = tpu.matmul %287, %33, %cst_48 {dimension_numbers = #tpu.dot_dimension_numbers<[1], [0], [0], [1], [0, 0, 1, 1], [], []>} : vector<2x32xbf16>, vector<32x128xbf16>, vector<2x128xf32> -> vector<2x128xf32>
    %289 = arith.addf %288, %36 : vector<2x128xf32>
    %290 = vector.extract_strided_slice %31 {offsets = [0, 6, 0], sizes = [2, 1, 128], strides = [1, 1, 1]} : vector<2x8x128xf32> to vector<2x1x128xf32>
    %291 = vector.shape_cast %290 : vector<2x1x128xf32> to vector<2x128xf32>
    %292 = arith.addf %291, %269 : vector<2x128xf32>
    %293 = arith.negf %292 : vector<2x128xf32>
    %294 = math.exp %293 : vector<2x128xf32>
    %cst_49 = arith.constant 1.000000e+00 : f32
    %295 = vector.broadcast %cst_49 : f32 to vector<2x128xf32>
    %296 = arith.addf %295, %294 : vector<2x128xf32>
    %297 = arith.divf %295, %296 : vector<2x128xf32>
    %298 = math.tanh %292 : vector<2x128xf32>
    %299 = vector.extract_strided_slice %297 {offsets = [0, 0], sizes = [2, 32], strides = [1, 1]} : vector<2x128xf32> to vector<2x32xf32>
    %300 = vector.extract_strided_slice %297 {offsets = [0, 32], sizes = [2, 32], strides = [1, 1]} : vector<2x128xf32> to vector<2x32xf32>
    %301 = vector.extract_strided_slice %298 {offsets = [0, 64], sizes = [2, 32], strides = [1, 1]} : vector<2x128xf32> to vector<2x32xf32>
    %302 = vector.extract_strided_slice %297 {offsets = [0, 96], sizes = [2, 32], strides = [1, 1]} : vector<2x128xf32> to vector<2x32xf32>
    %303 = arith.mulf %300, %264 : vector<2x32xf32>
    %304 = arith.mulf %299, %301 : vector<2x32xf32>
    %305 = arith.addf %303, %304 : vector<2x32xf32>
    %306 = math.tanh %305 : vector<2x32xf32>
    %307 = arith.mulf %302, %306 : vector<2x32xf32>
    %308 = arith.truncf %307 : vector<2x32xf32> to vector<2x32xbf16>
    %cst_50 = arith.constant dense<0.000000e+00> : vector<2x256xf32>
    %309 = tpu.matmul %308, %32, %cst_50 {dimension_numbers = #tpu.dot_dimension_numbers<[1], [0], [0], [1], [0, 0, 1, 1], [], []>} : vector<2x32xbf16>, vector<32x256xbf16>, vector<2x256xf32> -> vector<2x256xf32>
    %310 = vector.extract_strided_slice %309 {offsets = [0, 0], sizes = [2, 128], strides = [1, 1]} : vector<2x256xf32> to vector<2x128xf32>
    %311 = vector.extract_strided_slice %309 {offsets = [0, 128], sizes = [2, 128], strides = [1, 1]} : vector<2x256xf32> to vector<2x128xf32>
    %312 = arith.addf %311, %289 : vector<2x128xf32>
    %313 = arith.negf %312 : vector<2x128xf32>
    %314 = math.exp %313 : vector<2x128xf32>
    %cst_51 = arith.constant 1.000000e+00 : f32
    %315 = vector.broadcast %cst_51 : f32 to vector<2x128xf32>
    %316 = arith.addf %315, %314 : vector<2x128xf32>
    %317 = arith.divf %315, %316 : vector<2x128xf32>
    %318 = math.tanh %312 : vector<2x128xf32>
    %319 = vector.extract_strided_slice %317 {offsets = [0, 0], sizes = [2, 32], strides = [1, 1]} : vector<2x128xf32> to vector<2x32xf32>
    %320 = vector.extract_strided_slice %317 {offsets = [0, 32], sizes = [2, 32], strides = [1, 1]} : vector<2x128xf32> to vector<2x32xf32>
    %321 = vector.extract_strided_slice %318 {offsets = [0, 64], sizes = [2, 32], strides = [1, 1]} : vector<2x128xf32> to vector<2x32xf32>
    %322 = vector.extract_strided_slice %317 {offsets = [0, 96], sizes = [2, 32], strides = [1, 1]} : vector<2x128xf32> to vector<2x32xf32>
    %323 = arith.mulf %320, %284 : vector<2x32xf32>
    %324 = arith.mulf %319, %321 : vector<2x32xf32>
    %325 = arith.addf %323, %324 : vector<2x32xf32>
    %326 = math.tanh %325 : vector<2x32xf32>
    %327 = arith.mulf %322, %326 : vector<2x32xf32>
    %328 = arith.truncf %327 : vector<2x32xf32> to vector<2x32xbf16>
    %cst_52 = arith.constant dense<0.000000e+00> : vector<2x128xf32>
    %329 = tpu.matmul %328, %33, %cst_52 {dimension_numbers = #tpu.dot_dimension_numbers<[1], [0], [0], [1], [0, 0, 1, 1], [], []>} : vector<2x32xbf16>, vector<32x128xbf16>, vector<2x128xf32> -> vector<2x128xf32>
    %330 = arith.addf %329, %36 : vector<2x128xf32>
    %331 = vector.extract_strided_slice %31 {offsets = [0, 7, 0], sizes = [2, 1, 128], strides = [1, 1, 1]} : vector<2x8x128xf32> to vector<2x1x128xf32>
    %332 = vector.shape_cast %331 : vector<2x1x128xf32> to vector<2x128xf32>
    %333 = arith.addf %332, %310 : vector<2x128xf32>
    %334 = arith.negf %333 : vector<2x128xf32>
    %335 = math.exp %334 : vector<2x128xf32>
    %cst_53 = arith.constant 1.000000e+00 : f32
    %336 = vector.broadcast %cst_53 : f32 to vector<2x128xf32>
    %337 = arith.addf %336, %335 : vector<2x128xf32>
    %338 = arith.divf %336, %337 : vector<2x128xf32>
    %339 = math.tanh %333 : vector<2x128xf32>
    %340 = vector.extract_strided_slice %338 {offsets = [0, 0], sizes = [2, 32], strides = [1, 1]} : vector<2x128xf32> to vector<2x32xf32>
    %341 = vector.extract_strided_slice %338 {offsets = [0, 32], sizes = [2, 32], strides = [1, 1]} : vector<2x128xf32> to vector<2x32xf32>
    %342 = vector.extract_strided_slice %339 {offsets = [0, 64], sizes = [2, 32], strides = [1, 1]} : vector<2x128xf32> to vector<2x32xf32>
    %343 = vector.extract_strided_slice %338 {offsets = [0, 96], sizes = [2, 32], strides = [1, 1]} : vector<2x128xf32> to vector<2x32xf32>
    %344 = arith.mulf %341, %305 : vector<2x32xf32>
    %345 = arith.mulf %340, %342 : vector<2x32xf32>
    %346 = arith.addf %344, %345 : vector<2x32xf32>
    %347 = math.tanh %346 : vector<2x32xf32>
    %348 = arith.mulf %343, %347 : vector<2x32xf32>
    %349 = arith.truncf %348 : vector<2x32xf32> to vector<2x32xbf16>
    %cst_54 = arith.constant dense<0.000000e+00> : vector<2x256xf32>
    %350 = tpu.matmul %349, %32, %cst_54 {dimension_numbers = #tpu.dot_dimension_numbers<[1], [0], [0], [1], [0, 0, 1, 1], [], []>} : vector<2x32xbf16>, vector<32x256xbf16>, vector<2x256xf32> -> vector<2x256xf32>
    %351 = vector.extract_strided_slice %350 {offsets = [0, 128], sizes = [2, 128], strides = [1, 1]} : vector<2x256xf32> to vector<2x128xf32>
    %352 = arith.addf %351, %330 : vector<2x128xf32>
    %353 = arith.negf %352 : vector<2x128xf32>
    %354 = math.exp %353 : vector<2x128xf32>
    %cst_55 = arith.constant 1.000000e+00 : f32
    %355 = vector.broadcast %cst_55 : f32 to vector<2x128xf32>
    %356 = arith.addf %355, %354 : vector<2x128xf32>
    %357 = arith.divf %355, %356 : vector<2x128xf32>
    %358 = math.tanh %352 : vector<2x128xf32>
    %359 = vector.extract_strided_slice %357 {offsets = [0, 0], sizes = [2, 32], strides = [1, 1]} : vector<2x128xf32> to vector<2x32xf32>
    %360 = vector.extract_strided_slice %357 {offsets = [0, 32], sizes = [2, 32], strides = [1, 1]} : vector<2x128xf32> to vector<2x32xf32>
    %361 = vector.extract_strided_slice %358 {offsets = [0, 64], sizes = [2, 32], strides = [1, 1]} : vector<2x128xf32> to vector<2x32xf32>
    %362 = vector.extract_strided_slice %357 {offsets = [0, 96], sizes = [2, 32], strides = [1, 1]} : vector<2x128xf32> to vector<2x32xf32>
    %363 = arith.mulf %360, %325 : vector<2x32xf32>
    %364 = arith.mulf %359, %361 : vector<2x32xf32>
    %365 = arith.addf %363, %364 : vector<2x32xf32>
    %366 = math.tanh %365 : vector<2x32xf32>
    %367 = arith.mulf %362, %366 : vector<2x32xf32>
    %c0_56 = arith.constant 0 : index
    %c0_57 = arith.constant 0 : index
    %368 = vector.load %arg9[%c0_56, %c0_57] : memref<32x168xf32, #tpu.memory_space<vmem>>, vector<32x168xf32>
    %cst_58 = arith.constant dense<0.000000e+00> : vector<2x168xf32>
    %369 = tpu.matmul %367, %368, %cst_58 {dimension_numbers = #tpu.dot_dimension_numbers<[1], [0], [0], [1], [0, 0, 1, 1], [], []>} : vector<2x32xf32>, vector<32x168xf32>, vector<2x168xf32> -> vector<2x168xf32>
    %c0_59 = arith.constant 0 : index
    %c0_60 = arith.constant 0 : index
    %370 = vector.load %arg10[%c0_59, %c0_60] : memref<1x168xf32, #tpu.memory_space<vmem>>, vector<1x168xf32>
    %371 = vector.broadcast %370 : vector<1x168xf32> to vector<2x168xf32>
    %372 = arith.addf %369, %371 : vector<2x168xf32>
    %c0_61 = arith.constant 0 : index
    %c0_62 = arith.constant 0 : index
    %373 = vector.load %arg13[%c0_61, %c0_62] : memref<2x168xf32, #tpu.memory_space<vmem>>, vector<2x168xf32>
    tpu.vector_store %arg13[%c0_61, %c0_62], %372 {strides = array<i32>} : memref<2x168xf32, #tpu.memory_space<vmem>>, vector<2x168xf32>,
    %c0_63 = arith.constant 0 : index
    %c0_64 = arith.constant 0 : index
    %374 = vector.load %arg11[%c0_63, %c0_64] : memref<32x168xf32, #tpu.memory_space<vmem>>, vector<32x168xf32>
    %cst_65 = arith.constant dense<0.000000e+00> : vector<2x168xf32>
    %375 = tpu.matmul %367, %374, %cst_65 {dimension_numbers = #tpu.dot_dimension_numbers<[1], [0], [0], [1], [0, 0, 1, 1], [], []>} : vector<2x32xf32>, vector<32x168xf32>, vector<2x168xf32> -> vector<2x168xf32>
    %c0_66 = arith.constant 0 : index
    %c0_67 = arith.constant 0 : index
    %376 = vector.load %arg12[%c0_66, %c0_67] : memref<1x168xf32, #tpu.memory_space<vmem>>, vector<1x168xf32>
    %377 = vector.broadcast %376 : vector<1x168xf32> to vector<2x168xf32>
    %378 = arith.addf %375, %377 : vector<2x168xf32>
    %c0_68 = arith.constant 0 : index
    %c0_69 = arith.constant 0 : index
    %379 = vector.load %arg14[%c0_68, %c0_69] : memref<2x168xf32, #tpu.memory_space<vmem>>, vector<2x168xf32>
    tpu.vector_store %arg14[%c0_68, %c0_69], %378 {strides = array<i32>} : memref<2x168xf32, #tpu.memory_space<vmem>>, vector<2x168xf32>,
    return
  }
}

</mosaic_0001>

<llo_original>
// kernel: week_forecast_prob_lstm.1
$region0: #{week_forecast_prob_lstm.1}
  #allocation0 [shape = 'u32[]', space=smem, size = 0x4, offset = 0x4, fixed_abs, tag = 'smem constant byte address 0x4 - core index']
  #allocation1 [shape = 'u32[144,128]{1,0:T(1,128)}', space=vmem, size = 0x12000, scoped, tag = 'internal scratch']
  %s0 = inlined_call_operand.vmem [shape: f32[2,8,1], index: 0, kind: input, shape index: {}]
  %s1 = inlined_call_operand.vmem [shape: f32[2,8,1], index: 1, kind: input, shape index: {}]
  %s2 = inlined_call_operand.vmem [shape: f32[2,8,1], index: 2, kind: input, shape index: {}]
  %s3 = inlined_call_operand.vmem [shape: f32[2,8,1], index: 3, kind: input, shape index: {}]
  %s4 = inlined_call_operand.vmem [shape: f32[4,128], index: 4, kind: input, shape index: {}]
  %s5 = inlined_call_operand.hbm [shape: f32[1,128], index: 5, kind: input, shape index: {}]
  %s6 = inlined_call_operand.hbm [shape: bf16[32,256], index: 6, kind: input, shape index: {}]
  %s7 = inlined_call_operand.vmem [shape: bf16[32,128], index: 7, kind: input, shape index: {}]
  %s8 = inlined_call_operand.hbm [shape: f32[1,128], index: 8, kind: input, shape index: {}]
  %s9 = inlined_call_operand.vmem [shape: f32[32,168], index: 9, kind: input, shape index: {}]
  %s10 = inlined_call_operand.vmem [shape: f32[1,168], index: 10, kind: input, shape index: {}]
  %s11 = inlined_call_operand.hbm [shape: f32[32,168], index: 11, kind: input, shape index: {}]
  %s12 = inlined_call_operand.hbm [shape: f32[1,168], index: 12, kind: input, shape index: {}]
  %s13 = inlined_call_operand.hbm [shape: f32[2,168], index: 13, kind: output, shape index: {0}]
  %s14 = inlined_call_operand.hbm [shape: f32[2,168], index: 14, kind: output, shape index: {1}]
  %15 = xla_tuple %s13, %s14
  %s16 = sld [smem:[#allocation0]]
  $region90: #{week_forecast_prob_lstm.1} parent=0
    _
  %s18 = ssub.s32 1, %s16
  %s19 = scalar_select 0, %s18, %s16
  $region1: #{week_forecast_prob_lstm.1} parent=0
    #allocation2 [shape = 'u8[512]{0}', space=vmem, size = 0x400, scoped, tag = 'input window, operand 5, single buffered']
    #allocation3 [shape = 's32[1]{0}', space=sflag, size = 0x4, scoped, tag = 'scoped memory for week_forecast_prob_lstm.1']
    #allocation4 [shape = 's32[1]{0}', space=sflag, size = 0x4, scoped, tag = 'scoped memory for week_forecast_prob_lstm.1']
    #allocation5 [shape = 'u8[16384]{0}', space=vmem, size = 0x4000, scoped, tag = 'input window, operand 6, single buffered']
    #allocation6 [shape = 's32[1]{0}', space=sflag, size = 0x4, scoped, tag = 'scoped memory for week_forecast_prob_lstm.1']
    #allocation7 [shape = 'u8[512]{0}', space=vmem, size = 0x400, scoped, tag = 'input window, operand 8, single buffered']
    #allocation8 [shape = 'u8[32768]{0}', space=vmem, size = 0x8000, scoped, tag = 'input window, operand 11, single buffered']
    #allocation9 [shape = 's32[1]{0}', space=sflag, size = 0x4, scoped, tag = 'scoped memory for week_forecast_prob_lstm.1']
    #allocation10 [shape = 'u8[1024]{0}', space=vmem, size = 0x400, scoped, tag = 'input window, operand 12, single buffered']
    #allocation11 [shape = 'u8[2048]{0}', space=vmem, size = 0x800, scoped, tag = 'output window, operand 0, single buffered']
    #allocation12 [shape = 'u8[2048]{0}', space=vmem, size = 0x800, scoped, tag = 'output window, operand 1, single buffered']
    #allocation13 [shape = 's32[1]{0}', space=sflag, size = 0x4, scoped, tag = 'scoped memory for week_forecast_prob_lstm.1']
    %20 = vsyncpa [#allocation3], 0
    %21 = vsyncpa [#allocation6], 0
    %22 = vsyncpa [#allocation9], 0
    %23 = vsyncpa [#allocation4], 0
    %24 = vsyncpa [#allocation13], 0
    // Predicated region
    $region2: #{week_forecast_prob_lstm.1} parent=1 // pred_check
      _
    $region3: #{week_forecast_prob_lstm.1} parent=1 // pred_check_branch
      %26 = sbr.rel (0) target = $region5
    $region4: #{week_forecast_prob_lstm.1} parent=1 // pred_region
      _
    $region5: #{week_forecast_prob_lstm.1} parent=1 // pred_fallthru
      _
    // Predicated region
    $region6: #{week_forecast_prob_lstm.1} parent=1 // pred_check
      _
    $region7: #{week_forecast_prob_lstm.1} parent=1 // pred_check_branch
      %28 = sbr.rel (0) target = $region9
    $region8: #{week_forecast_prob_lstm.1} parent=1 // pred_region
      _
    $region9: #{week_forecast_prob_lstm.1} parent=1 // pred_fallthru
      _
    // Predicated region
    $region10: #{week_forecast_prob_lstm.1} parent=1 // pred_check
      _
    $region11: #{week_forecast_prob_lstm.1} parent=1 // pred_check_branch
      %30 = sbr.rel (0) target = $region13
    $region12: #{week_forecast_prob_lstm.1} parent=1 // pred_region
      _
    $region13: #{week_forecast_prob_lstm.1} parent=1 // pred_fallthru
      _
    // Predicated region
    $region14: #{week_forecast_prob_lstm.1} parent=1 // pred_check
      _
    $region15: #{week_forecast_prob_lstm.1} parent=1 // pred_check_branch
      %32 = sbr.rel (0) target = $region17
    $region16: #{week_forecast_prob_lstm.1} parent=1 // pred_region
      _
    $region17: #{week_forecast_prob_lstm.1} parent=1 // pred_fallthru
      _
    // Predicated region
    $region18: #{week_forecast_prob_lstm.1} parent=1 // pred_check
      _
    $region19: #{week_forecast_prob_lstm.1} parent=1 // pred_check_branch
      %34 = sbr.rel (0) target = $region21
    $region20: #{week_forecast_prob_lstm.1} parent=1 // pred_region
      _
    $region21: #{week_forecast_prob_lstm.1} parent=1 // pred_fallthru
      _
    // Predicated region
    $region22: #{week_forecast_prob_lstm.1} parent=1 // pred_check
      _
    $region23: #{week_forecast_prob_lstm.1} parent=1 // pred_check_branch
      %36 = sbr.rel (0) target = $region25
    $region24: #{week_forecast_prob_lstm.1} parent=1 // pred_region
      %s38 = ssub.s32 16, 16
      %39 = vsyncadd [#allocation3], %s38
      %s41 = sshll.u32 [#allocation2], 4
      %s42 = int_to_ptr.vmem [resolvable:$true] %s41
      %44 = dma.hbm_to_vmem [thread:$0]  %s5, 16, %s42, [#allocation3]
    $region25: #{week_forecast_prob_lstm.1} parent=1 // pred_fallthru
      _
    // Predicated region
    $region26: #{week_forecast_prob_lstm.1} parent=1 // pred_check
      _
    $region27: #{week_forecast_prob_lstm.1} parent=1 // pred_check_branch
      %46 = sbr.rel (0) target = $region29
    $region28: #{week_forecast_prob_lstm.1} parent=1 // pred_region
      %s48 = ssub.s32 512, 512
      %49 = vsyncadd [#allocation6], %s48
      %s50 = sshll.u32 [#allocation5], 4
      %s51 = int_to_ptr.vmem [resolvable:$true] %s50
      %56 = dma.hbm_to_vmem [thread:$0]  %s6, 512, %s51, [#allocation6], 128, 128, 8
    $region29: #{week_forecast_prob_lstm.1} parent=1 // pred_fallthru
      _
    // Predicated region
    $region30: #{week_forecast_prob_lstm.1} parent=1 // pred_check
      _
    $region31: #{week_forecast_prob_lstm.1} parent=1 // pred_check_branch
      %58 = sbr.rel (0) target = $region33
    $region32: #{week_forecast_prob_lstm.1} parent=1 // pred_region
      _
    $region33: #{week_forecast_prob_lstm.1} parent=1 // pred_fallthru
      _
    // Predicated region
    $region34: #{week_forecast_prob_lstm.1} parent=1 // pred_check
      _
    $region35: #{week_forecast_prob_lstm.1} parent=1 // pred_check_branch
      %60 = sbr.rel (0) target = $region37
    $region36: #{week_forecast_prob_lstm.1} parent=1 // pred_region
      %s62 = ssub.s32 16, 16
      %63 = vsyncadd [#allocation6], %s62
      %s65 = sshll.u32 [#allocation7], 4
      %s66 = int_to_ptr.vmem [resolvable:$true] %s65
      %68 = dma.hbm_to_vmem [thread:$0]  %s8, 16, %s66, [#allocation6]
    $region37: #{week_forecast_prob_lstm.1} parent=1 // pred_fallthru
      _
    // Predicated region
    $region38: #{week_forecast_prob_lstm.1} parent=1 // pred_check
      _
    $region39: #{week_forecast_prob_lstm.1} parent=1 // pred_check_branch
      %70 = sbr.rel (0) target = $region41
    $region40: #{week_forecast_prob_lstm.1} parent=1 // pred_region
      _
    $region41: #{week_forecast_prob_lstm.1} parent=1 // pred_fallthru
      _
    // Predicated region
    $region42: #{week_forecast_prob_lstm.1} parent=1 // pred_check
      _
    $region43: #{week_forecast_prob_lstm.1} parent=1 // pred_check_branch
      %72 = sbr.rel (0) target = $region45
    $region44: #{week_forecast_prob_lstm.1} parent=1 // pred_region
      _
    $region45: #{week_forecast_prob_lstm.1} parent=1 // pred_fallthru
      _
    // Predicated region
    $region46: #{week_forecast_prob_lstm.1} parent=1 // pred_check
      _
    $region47: #{week_forecast_prob_lstm.1} parent=1 // pred_check_branch
      %74 = sbr.rel (0) target = $region49
    $region48: #{week_forecast_prob_lstm.1} parent=1 // pred_region
      %s76 = ssub.s32 1024, 1024
      %77 = vsyncadd [#allocation9], %s76
      %s78 = sshll.u32 [#allocation8], 4
      %s79 = int_to_ptr.vmem [resolvable:$true] %s78
      %84 = dma.hbm_to_vmem [thread:$0]  %s11, 1024, %s79, [#allocation9], 256, 256, 16
    $region49: #{week_forecast_prob_lstm.1} parent=1 // pred_fallthru
      _
    // Predicated region
    $region50: #{week_forecast_prob_lstm.1} parent=1 // pred_check
      _
    $region51: #{week_forecast_prob_lstm.1} parent=1 // pred_check_branch
      %86 = sbr.rel (0) target = $region53
    $region52: #{week_forecast_prob_lstm.1} parent=1 // pred_region
      %s88 = ssub.s32 32, 32
      %89 = vsyncadd [#allocation9], %s88
      %s91 = sshll.u32 [#allocation10], 4
      %s92 = int_to_ptr.vmem [resolvable:$true] %s91
      %94 = dma.hbm_to_vmem [thread:$0]  %s12, 32, %s92, [#allocation9]
    $region53: #{week_forecast_prob_lstm.1} parent=1 // pred_fallthru
      _
    // Predicated region
    $region54: #{week_forecast_prob_lstm.1} parent=1 // pred_check
      _
    $region55: #{week_forecast_prob_lstm.1} parent=1 // pred_check_branch
      %96 = sbr.rel (0) target = $region57
    $region56: #{week_forecast_prob_lstm.1} parent=1 // pred_region
      %97 = dma.done [#allocation3], 16
    $region57: #{week_forecast_prob_lstm.1} parent=1 // pred_fallthru
      _
    // Predicated region
    $region58: #{week_forecast_prob_lstm.1} parent=1 // pred_check
      _
    $region59: #{week_forecast_prob_lstm.1} parent=1 // pred_check_branch
      %99 = sbr.rel (0) target = $region61
    $region60: #{week_forecast_prob_lstm.1} parent=1 // pred_region
      %100 = dma.done [#allocation6], 512
    $region61: #{week_forecast_prob_lstm.1} parent=1 // pred_fallthru
      _
    // Predicated region
    $region62: #{week_forecast_prob_lstm.1} parent=1 // pred_check
      _
    $region63: #{week_forecast_prob_lstm.1} parent=1 // pred_check_branch
      %102 = sbr.rel (0) target = $region65
    $region64: #{week_forecast_prob_lstm.1} parent=1 // pred_region
      %103 = dma.done [#allocation6], 16
    $region65: #{week_forecast_prob_lstm.1} parent=1 // pred_fallthru
      _
    // Predicated region
    $region66: #{week_forecast_prob_lstm.1} parent=1 // pred_check
      _
    $region67: #{week_forecast_prob_lstm.1} parent=1 // pred_check_branch
      %105 = sbr.rel (0) target = $region69
    $region68: #{week_forecast_prob_lstm.1} parent=1 // pred_region
      %106 = dma.done [#allocation9], 1024
    $region69: #{week_forecast_prob_lstm.1} parent=1 // pred_fallthru
      _
    // Predicated region
    $region70: #{week_forecast_prob_lstm.1} parent=1 // pred_check
      _
    $region71: #{week_forecast_prob_lstm.1} parent=1 // pred_check_branch
      %108 = sbr.rel (0) target = $region73
    $region72: #{week_forecast_prob_lstm.1} parent=1 // pred_region
      %109 = dma.done [#allocation9], 32
    $region73: #{week_forecast_prob_lstm.1} parent=1 // pred_fallthru
      _
    %v111 = vld [vmem:[%s4] sm:$0xf]
    %v112 = vld [vmem:[%s0] sm:$0xff]
    %v113 = vld [vmem:[%s0 + $0x8] sm:$0xff]
    %115 = vset.pattern.permute.xlu0 0
    %116 = vperm.xlu0 %115, %v112
    %v117 = vpop.permute.xlu0 %116
    %120 = vset.pattern.permute.xlu0 0
    %121 = vperm.xlu0 %120, %v113
    %v122 = vpop.permute.xlu0 %121
    %v124 = vlaneseq
    %v125 = vshrl.u32 %v124, 7
    %v126 = vsub.s32 0, %v125
    %v127 = vrot.slane %v111, %v126
    %v128 = vmul.f32 %v117, %v127
    %v129 = vmul.f32 %v122, %v127
    %v130 = vld [vmem:[%s1] sm:$0xff]
    %v131 = vld [vmem:[%s1 + $0x8] sm:$0xff]
    %133 = vset.pattern.permute.xlu0 0
    %134 = vperm.xlu0 %133, %v130
    %v135 = vpop.permute.xlu0 %134
    %138 = vset.pattern.permute.xlu0 0
    %139 = vperm.xlu0 %138, %v131
    %v140 = vpop.permute.xlu0 %139
    %v142 = vlaneseq
    %v143 = vshrl.u32 %v142, 7
    %v144 = vsub.s32 1, %v143
    %v145 = vrot.slane %v111, %v144
    %v146 = vmul.f32 %v135, %v145
    %v147 = vmul.f32 %v140, %v145
    %v148 = vadd.f32 %v128, %v146
    %v149 = vadd.f32 %v129, %v147
    %v150 = vld [vmem:[%s2] sm:$0xff]
    %v151 = vld [vmem:[%s2 + $0x8] sm:$0xff]
    %153 = vset.pattern.permute.xlu0 0
    %154 = vperm.xlu0 %153, %v150
    %v155 = vpop.permute.xlu0 %154
    %158 = vset.pattern.permute.xlu0 0
    %159 = vperm.xlu0 %158, %v151
    %v160 = vpop.permute.xlu0 %159
    %v162 = vlaneseq
    %v163 = vshrl.u32 %v162, 7
    %v164 = vsub.s32 2, %v163
    %v165 = vrot.slane %v111, %v164
    %v166 = vmul.f32 %v155, %v165
    %v167 = vmul.f32 %v160, %v165
    %v168 = vadd.f32 %v148, %v166
    %v169 = vadd.f32 %v149, %v167
    %v170 = vld [vmem:[%s3] sm:$0xff]
    %v171 = vld [vmem:[%s3 + $0x8] sm:$0xff]
    %173 = vset.pattern.permute.xlu0 0
    %174 = vperm.xlu0 %173, %v170
    %v175 = vpop.permute.xlu0 %174
    %178 = vset.pattern.permute.xlu0 0
    %179 = vperm.xlu0 %178, %v171
    %v180 = vpop.permute.xlu0 %179
    %v182 = vlaneseq
    %v183 = vshrl.u32 %v182, 7
    %v184 = vsub.s32 3, %v183
    %v185 = vrot.slane %v111, %v184
    %v186 = vmul.f32 %v175, %v185
    %v187 = vmul.f32 %v180, %v185
    %v188 = vadd.f32 %v168, %v186
    %v189 = vadd.f32 %v169, %v187
    %v190 = vld [vmem:[#allocation2] sm:$0x1]
    %v192 = vlaneseq
    %v193 = vshrl.u32 %v192, 7
    %v194 = vsub.s32 0, %v193
    %v195 = vrot.slane %v190, %v194
    %v197 = vadd.f32 %v188, %v195
    %v198 = vadd.f32 %v189, %v195
    %v199 = vld [vmem:[#allocation5] sm:$0xff]
    %v200 = vld [vmem:[#allocation5 + $0x8] sm:$0xff]
    %v201 = vld [vmem:[#allocation5 + $0x10] sm:$0xff]
    %v202 = vld [vmem:[#allocation5 + $0x18] sm:$0xff]
    %v203 = vld [vmem:[%s7] sm:$0xf]
    %v204 = vld [vmem:[%s7 + $0x4] sm:$0xf]
    %v205 = vld [vmem:[%s7 + $0x8] sm:$0xf]
    %v206 = vld [vmem:[%s7 + $0xc] sm:$0xf]
    %v207 = vld [vmem:[#allocation7] sm:$0x1]
    %v209 = vlaneseq
    %v210 = vshrl.u32 %v209, 7
    %v211 = vsub.s32 0, %v210
    %v212 = vrot.slane %v207, %v211
    %v218 = vunpack.c.l.b16 %v203
    %v219 = vunpack.c.l.b16 %v204
    %v220 = vunpack.c.l.b16 %v205
    %v221 = vunpack.c.l.b16 %v206
    %v222 = vpack.c.b16 %v219, %v218
    %v223 = vpack.c.b16 %v221, %v220
    %vm226 = vcmask 261120
    %v228 = vsel %vm226, 0, 0
    %230 = vmatprep.subr.bf16.mxu0 0
    %231 = vmatpush1.bf16.msra.mxu0 0
    %232 = vmatprep.subr.bf16.mxu0 0
    %233 = vmatpush1.bf16.msra.mxu0 0
    %234 = vmatprep.subr.bf16.mxu0 0
    %235 = vmatpush1.bf16.msra.mxu0 0
    %236 = vmatprep.subr.bf16.mxu0 0
    %237 = vmatpush1.bf16.msra.mxu0 0
    %238 = vmatprep.subr.bf16.mxu0 0
    %239 = vmatpush1.bf16.msra.mxu0 0
    %240 = vmatprep.subr.bf16.mxu0 0
    %241 = vmatpush1.bf16.msra.mxu0 0
    %242 = vmatprep.subr.bf16.mxu0 0
    %243 = vmatpush1.bf16.msra.mxu0 %v223
    %244 = vmatprep.subr.bf16.mxu0 0
    %245 = vmatpush1.bf16.msra.mxu0 %v222
    %246 = vmatprep.subr.bf16.mxu0 0
    %247 = vmatpush2.bf16.msra.mxu0 0
    %248 = vmatprep.subr.bf16.mxu0 0
    %249 = vmatpush2.bf16.msra.mxu0 0
    %250 = vmatprep.subr.bf16.mxu0 0
    %251 = vmatpush2.bf16.msra.mxu0 0
    %252 = vmatprep.subr.bf16.mxu0 0
    %253 = vmatpush2.bf16.msra.mxu0 0
    %254 = vmatprep.subr.bf16.mxu0 0
    %255 = vmatpush2.bf16.msra.mxu0 0
    %256 = vmatprep.subr.bf16.mxu0 0
    %257 = vmatpush2.bf16.msra.mxu0 0
    %258 = vmatprep.subr.bf16.mxu0 0
    %259 = vmatpush2.bf16.msra.mxu0 0
    %260 = vmatprep.subr.bf16.mxu0 0
    %261 = vmatpush2.bf16.msra.mxu0 0
    %262 = vmatprep.mubr.bf16.mxu0 0
    %263 = vmatmul.mubr.bf16.gmra.mxu0 %v228
    %v264 = vpop.f32.mrf.mxu0
    %v265 = vadd.f32 %v212, %v264
    %v266 = vpop.f32.mrf.mxu0
    %v267 = vpop.f32.mrf.mxu0
    %v268 = vpop.f32.mrf.mxu0
    %269 = vdwg.mxu0
    %v270 = vadd.f32 %v197, 0.0
    %v271 = vadd.f32 %v198, 0.0
    %v272 = vxor.u32 %v270, 2147483648
    %v273 = vxor.u32 %v271, 2147483648
    %v274 = vmul.f32 %v272, 1.442695
    %v275 = vpow.pop %v274
    %v276 = vmul.f32 %v273, 1.442695
    %v277 = vpow.pop %v276
    %v278 = vadd.f32 %v275, 1.0
    %v279 = vadd.f32 %v277, 1.0
    %v280 = vrcp.pop %v278
    %v281 = vmul.f32 1.0, %v280
    %v282 = vrcp.pop %v279
    %v283 = vmul.f32 1.0, %v282
    %v284 = vtanh.pop %v270
    %v285 = vtanh.pop %v271
    %v286 = vmul.f32 %v281, 0.0
    %v287 = vmul.f32 %v283, 0.0
    %290 = vrot.lane.b32.xlu0 %v284, 64
    %v291 = vpop.permute.xlu0 %290
    %292 = vrot.lane.b32.xlu0 %v285, 64
    %v293 = vpop.permute.xlu0 %292
    %v296 = vmul.f32 %v281, %v291
    %v297 = vmul.f32 %v283, %v293
    %300 = vrot.lane.b32.xlu0 %v296, 32
    %v301 = vpop.permute.xlu0 %300
    %302 = vrot.lane.b32.xlu0 %v297, 32
    %v303 = vpop.permute.xlu0 %302
    %v306 = vadd.f32 %v286, %v301
    %v307 = vadd.f32 %v287, %v303
    %v308 = vtanh.pop %v306
    %v309 = vtanh.pop %v307
    %312 = vrot.lane.b32.xlu0 %v308, 64
    %v313 = vpop.permute.xlu0 %312
    %314 = vrot.lane.b32.xlu0 %v309, 64
    %v315 = vpop.permute.xlu0 %314
    %v318 = vmul.f32 %v281, %v313
    %v319 = vmul.f32 %v283, %v315
    %v320 = vpack.c.bf16 %v318, %v318
    %v321 = vpack.c.bf16 %v319, %v319
    %v324 = vunpack.c.l.b16 %v320
    %v325 = vunpack.c.l.b16 %v321
    %v326 = vrot.slane %v325, 7
    %vm327 = vcmask 1041409
    %v328 = vsel %vm327, %v326, %v324
    %v329 = vpack.c.b16 %v328, %v328
    %330 = vrot.lane.b32.xlu0 %v329, 32
    %v331 = vpop.permute.xlu0 %330
    %v336 = vunpack.c.l.b16 %v199
    %v337 = vunpack.c.h.b16 %v199
    %v338 = vunpack.c.l.b16 %v200
    %v339 = vunpack.c.h.b16 %v200
    %v340 = vunpack.c.l.b16 %v201
    %v341 = vunpack.c.h.b16 %v201
    %v342 = vunpack.c.l.b16 %v202
    %v343 = vunpack.c.h.b16 %v202
    %v344 = vpack.c.b16 %v338, %v336
    %v345 = vpack.c.b16 %v339, %v337
    %v346 = vpack.c.b16 %v342, %v340
    %v347 = vpack.c.b16 %v343, %v341
    %v353 = vsel %vm226, %v331, 0
    %355 = vmatprep.subr.bf16.mxu0 0
    %356 = vmatpush1.bf16.msra.mxu0 0
    %357 = vmatprep.subr.bf16.mxu0 0
    %358 = vmatpush1.bf16.msra.mxu0 0
    %359 = vmatprep.subr.bf16.mxu0 0
    %360 = vmatpush1.bf16.msra.mxu0 0
    %361 = vmatprep.subr.bf16.mxu0 0
    %362 = vmatpush1.bf16.msra.mxu0 0
    %363 = vmatprep.subr.bf16.mxu0 0
    %364 = vmatpush1.bf16.msra.mxu0 0
    %365 = vmatprep.subr.bf16.mxu0 0
    %366 = vmatpush1.bf16.msra.mxu0 0
    %367 = vmatprep.subr.bf16.mxu0 %v347
    %368 = vmatpush1.bf16.msra.mxu0 %v346
    %369 = vmatprep.subr.bf16.mxu0 %v345
    %370 = vmatpush1.bf16.msra.mxu0 %v344
    %371 = vmatprep.subr.bf16.mxu0 0
    %372 = vmatpush2.bf16.msra.mxu0 0
    %373 = vmatprep.subr.bf16.mxu0 0
    %374 = vmatpush2.bf16.msra.mxu0 0
    %375 = vmatprep.subr.bf16.mxu0 0
    %376 = vmatpush2.bf16.msra.mxu0 0
    %377 = vmatprep.subr.bf16.mxu0 0
    %378 = vmatpush2.bf16.msra.mxu0 0
    %379 = vmatprep.subr.bf16.mxu0 0
    %380 = vmatpush2.bf16.msra.mxu0 0
    %381 = vmatprep.subr.bf16.mxu0 0
    %382 = vmatpush2.bf16.msra.mxu0 0
    %383 = vmatprep.subr.bf16.mxu0 0
    %384 = vmatpush2.bf16.msra.mxu0 0
    %385 = vmatprep.subr.bf16.mxu0 0
    %386 = vmatpush2.bf16.msra.mxu0 0
    %387 = vmatprep.mubr.bf16.mxu0 0
    %388 = vmatmul.mubr.bf16.gmra.mxu0 %v353
    %v389 = vpop.f32.mrf.mxu0
    %v390 = vadd.f32 0.0, %v389
    %v391 = vpop.f32.mrf.mxu0
    %v392 = vadd.f32 0.0, %v391
    %v393 = vpop.f32.mrf.mxu0
    %v394 = vpop.f32.mrf.mxu0
    %395 = vdwg.mxu0
    %v396 = vadd.f32 %v392, %v265
    %v397 = vxor.u32 %v396, 2147483648
    %v398 = vmul.f32 %v397, 1.442695
    %v399 = vpow.pop %v398
    %v400 = vadd.f32 %v399, 1.0
    %v401 = vrcp.pop %v400
    %v402 = vmul.f32 1.0, %v401
    %v403 = vtanh.pop %v396
    %v404 = vmul.f32 %v402, 0.0
    %406 = vrot.lane.b32.xlu0 %v403, 64
    %v407 = vpop.permute.xlu0 %406
    %v409 = vmul.f32 %v402, %v407
    %411 = vrot.lane.b32.xlu0 %v409, 32
    %v412 = vpop.permute.xlu0 %411
    %v414 = vadd.f32 %v404, %v412
    %v415 = vtanh.pop %v414
    %417 = vrot.lane.b32.xlu0 %v415, 64
    %v418 = vpop.permute.xlu0 %417
    %v420 = vmul.f32 %v402, %v418
    %v421 = vpack.c.bf16 %v420, %v420
    %423 = vrot.lane.b32.xlu0 %v421, 32
    %v424 = vpop.permute.xlu0 %423
    %v426 = vsel %vm226, %v424, 0
    %428 = vmatprep.subr.bf16.mxu0 0
    %429 = vmatpush1.bf16.msra.mxu0 0
    %430 = vmatprep.subr.bf16.mxu0 0
    %431 = vmatpush1.bf16.msra.mxu0 0
    %432 = vmatprep.subr.bf16.mxu0 0
    %433 = vmatpush1.bf16.msra.mxu0 0
    %434 = vmatprep.subr.bf16.mxu0 0
    %435 = vmatpush1.bf16.msra.mxu0 0
    %436 = vmatprep.subr.bf16.mxu0 0
    %437 = vmatpush1.bf16.msra.mxu0 0
    %438 = vmatprep.subr.bf16.mxu0 0
    %439 = vmatpush1.bf16.msra.mxu0 0
    %440 = vmatprep.subr.bf16.mxu0 0
    %441 = vmatpush1.bf16.msra.mxu0 %v223
    %442 = vmatprep.subr.bf16.mxu0 0
    %443 = vmatpush1.bf16.msra.mxu0 %v222
    %444 = vmatprep.subr.bf16.mxu0 0
    %445 = vmatpush2.bf16.msra.mxu0 0
    %446 = vmatprep.subr.bf16.mxu0 0
    %447 = vmatpush2.bf16.msra.mxu0 0
    %448 = vmatprep.subr.bf16.mxu0 0
    %449 = vmatpush2.bf16.msra.mxu0 0
    %450 = vmatprep.subr.bf16.mxu0 0
    %451 = vmatpush2.bf16.msra.mxu0 0
    %452 = vmatprep.subr.bf16.mxu0 0
    %453 = vmatpush2.bf16.msra.mxu0 0
    %454 = vmatprep.subr.bf16.mxu0 0
    %455 = vmatpush2.bf16.msra.mxu0 0
    %456 = vmatprep.subr.bf16.mxu0 0
    %457 = vmatpush2.bf16.msra.mxu0 0
    %458 = vmatprep.subr.bf16.mxu0 0
    %459 = vmatpush2.bf16.msra.mxu0 0
    %460 = vmatprep.mubr.bf16.mxu0 0
    %461 = vmatmul.mubr.bf16.gmra.mxu0 %v426
    %v462 = vpop.f32.mrf.mxu0
    %v463 = vadd.f32 %v212, %v462
    %v464 = vpop.f32.mrf.mxu0
    %v465 = vpop.f32.mrf.mxu0
    %v466 = vpop.f32.mrf.mxu0
    %467 = vdwg.mxu0
    %v469 = vrot.slane %v390, 7
    %v472 = vadd.f32 %v197, %v469
    %v473 = vadd.f32 %v198, %v390
    %v474 = vxor.u32 %v472, 2147483648
    %v475 = vxor.u32 %v473, 2147483648
    %v476 = vmul.f32 %v474, 1.442695
    %v477 = vpow.pop %v476
    %v478 = vmul.f32 %v475, 1.442695
    %v479 = vpow.pop %v478
    %v480 = vadd.f32 %v477, 1.0
    %v481 = vadd.f32 %v479, 1.0
    %v482 = vrcp.pop %v480
    %v483 = vmul.f32 1.0, %v482
    %v484 = vrcp.pop %v481
    %v485 = vmul.f32 1.0, %v484
    %v486 = vtanh.pop %v472
    %v487 = vtanh.pop %v473
    %v490 = vrot.slane %v306, 7
    %v491 = vrot.slane %v307, 7
    %v494 = vmul.f32 %v483, %v490
    %v495 = vmul.f32 %v485, %v491
    %498 = vrot.lane.b32.xlu0 %v486, 64
    %v499 = vpop.permute.xlu0 %498
    %500 = vrot.lane.b32.xlu0 %v487, 64
    %v501 = vpop.permute.xlu0 %500
    %v504 = vmul.f32 %v483, %v499
    %v505 = vmul.f32 %v485, %v501
    %508 = vrot.lane.b32.xlu0 %v504, 32
    %v509 = vpop.permute.xlu0 %508
    %510 = vrot.lane.b32.xlu0 %v505, 32
    %v511 = vpop.permute.xlu0 %510
    %v514 = vadd.f32 %v494, %v509
    %v515 = vadd.f32 %v495, %v511
    %v516 = vtanh.pop %v514
    %v517 = vtanh.pop %v515
    %520 = vrot.lane.b32.xlu0 %v516, 64
    %v521 = vpop.permute.xlu0 %520
    %522 = vrot.lane.b32.xlu0 %v517, 64
    %v523 = vpop.permute.xlu0 %522
    %v526 = vmul.f32 %v483, %v521
    %v527 = vmul.f32 %v485, %v523
    %v528 = vpack.c.bf16 %v526, %v526
    %v529 = vpack.c.bf16 %v527, %v527
    %v532 = vunpack.c.l.b16 %v528
    %v533 = vunpack.c.l.b16 %v529
    %v534 = vrot.slane %v532, 1
    %v535 = vsel %vm327, %v533, %v534
    %v536 = vpack.c.b16 %v535, %v535
    %537 = vrot.lane.b32.xlu0 %v536, 32
    %v538 = vpop.permute.xlu0 %537
    %v540 = vsel %vm226, %v538, 0
    %542 = vmatprep.subr.bf16.mxu0 0
    %543 = vmatpush1.bf16.msra.mxu0 0
    %544 = vmatprep.subr.bf16.mxu0 0
    %545 = vmatpush1.bf16.msra.mxu0 0
    %546 = vmatprep.subr.bf16.mxu0 0
    %547 = vmatpush1.bf16.msra.mxu0 0
    %548 = vmatprep.subr.bf16.mxu0 0
    %549 = vmatpush1.bf16.msra.mxu0 0
    %550 = vmatprep.subr.bf16.mxu0 0
    %551 = vmatpush1.bf16.msra.mxu0 0
    %552 = vmatprep.subr.bf16.mxu0 0
    %553 = vmatpush1.bf16.msra.mxu0 0
    %554 = vmatprep.subr.bf16.mxu0 %v347
    %555 = vmatpush1.bf16.msra.mxu0 %v346
    %556 = vmatprep.subr.bf16.mxu0 %v345
    %557 = vmatpush1.bf16.msra.mxu0 %v344
    %558 = vmatprep.subr.bf16.mxu0 0
    %559 = vmatpush2.bf16.msra.mxu0 0
    %560 = vmatprep.subr.bf16.mxu0 0
    %561 = vmatpush2.bf16.msra.mxu0 0
    %562 = vmatprep.subr.bf16.mxu0 0
    %563 = vmatpush2.bf16.msra.mxu0 0
    %564 = vmatprep.subr.bf16.mxu0 0
    %565 = vmatpush2.bf16.msra.mxu0 0
    %566 = vmatprep.subr.bf16.mxu0 0
    %567 = vmatpush2.bf16.msra.mxu0 0
    %568 = vmatprep.subr.bf16.mxu0 0
    %569 = vmatpush2.bf16.msra.mxu0 0
    %570 = vmatprep.subr.bf16.mxu0 0
    %571 = vmatpush2.bf16.msra.mxu0 0
    %572 = vmatprep.subr.bf16.mxu0 0
    %573 = vmatpush2.bf16.msra.mxu0 0
    %574 = vmatprep.mubr.bf16.mxu0 0
    %575 = vmatmul.mubr.bf16.gmra.mxu0 %v540
    %v576 = vpop.f32.mrf.mxu0
    %v577 = vadd.f32 0.0, %v576
    %v578 = vpop.f32.mrf.mxu0
    %v579 = vadd.f32 0.0, %v578
    %v580 = vpop.f32.mrf.mxu0
    %v581 = vpop.f32.mrf.mxu0
    %582 = vdwg.mxu0
    %v583 = vadd.f32 %v579, %v463
    %v584 = vxor.u32 %v583, 2147483648
    %v585 = vmul.f32 %v584, 1.442695
    %v586 = vpow.pop %v585
    %v587 = vadd.f32 %v586, 1.0
    %v588 = vrcp.pop %v587
    %v589 = vmul.f32 1.0, %v588
    %v590 = vtanh.pop %v583
    %v591 = vmul.f32 %v589, %v414
    %593 = vrot.lane.b32.xlu0 %v590, 64
    %v594 = vpop.permute.xlu0 %593
    %v596 = vmul.f32 %v589, %v594
    %598 = vrot.lane.b32.xlu0 %v596, 32
    %v599 = vpop.permute.xlu0 %598
    %v601 = vadd.f32 %v591, %v599
    %v602 = vtanh.pop %v601
    %604 = vrot.lane.b32.xlu0 %v602, 64
    %v605 = vpop.permute.xlu0 %604
    %v607 = vmul.f32 %v589, %v605
    %v608 = vpack.c.bf16 %v607, %v607
    %610 = vrot.lane.b32.xlu0 %v608, 32
    %v611 = vpop.permute.xlu0 %610
    %v613 = vsel %vm226, %v611, 0
    %615 = vmatprep.subr.bf16.mxu0 0
    %616 = vmatpush1.bf16.msra.mxu0 0
    %617 = vmatprep.subr.bf16.mxu0 0
    %618 = vmatpush1.bf16.msra.mxu0 0
    %619 = vmatprep.subr.bf16.mxu0 0
    %620 = vmatpush1.bf16.msra.mxu0 0
    %621 = vmatprep.subr.bf16.mxu0 0
    %622 = vmatpush1.bf16.msra.mxu0 0
    %623 = vmatprep.subr.bf16.mxu0 0
    %624 = vmatpush1.bf16.msra.mxu0 0
    %625 = vmatprep.subr.bf16.mxu0 0
    %626 = vmatpush1.bf16.msra.mxu0 0
    %627 = vmatprep.subr.bf16.mxu0 0
    %628 = vmatpush1.bf16.msra.mxu0 %v223
    %629 = vmatprep.subr.bf16.mxu0 0
    %630 = vmatpush1.bf16.msra.mxu0 %v222
    %631 = vmatprep.subr.bf16.mxu0 0
    %632 = vmatpush2.bf16.msra.mxu0 0
    %633 = vmatprep.subr.bf16.mxu0 0
    %634 = vmatpush2.bf16.msra.mxu0 0
    %635 = vmatprep.subr.bf16.mxu0 0
    %636 = vmatpush2.bf16.msra.mxu0 0
    %637 = vmatprep.subr.bf16.mxu0 0
    %638 = vmatpush2.bf16.msra.mxu0 0
    %639 = vmatprep.subr.bf16.mxu0 0
    %640 = vmatpush2.bf16.msra.mxu0 0
    %641 = vmatprep.subr.bf16.mxu0 0
    %642 = vmatpush2.bf16.msra.mxu0 0
    %643 = vmatprep.subr.bf16.mxu0 0
    %644 = vmatpush2.bf16.msra.mxu0 0
    %645 = vmatprep.subr.bf16.mxu0 0
    %646 = vmatpush2.bf16.msra.mxu0 0
    %647 = vmatprep.mubr.bf16.mxu0 0
    %648 = vmatmul.mubr.bf16.gmra.mxu0 %v613
    %v649 = vpop.f32.mrf.mxu0
    %v650 = vadd.f32 %v212, %v649
    %v651 = vpop.f32.mrf.mxu0
    %v652 = vpop.f32.mrf.mxu0
    %v653 = vpop.f32.mrf.mxu0
    %654 = vdwg.mxu0
    %v656 = vrot.slane %v577, 6
    %v657 = vrot.slane %v577, 7
    %v660 = vadd.f32 %v197, %v656
    %v661 = vadd.f32 %v198, %v657
    %v662 = vxor.u32 %v660, 2147483648
    %v663 = vxor.u32 %v661, 2147483648
    %v664 = vmul.f32 %v662, 1.442695
    %v665 = vpow.pop %v664
    %v666 = vmul.f32 %v663, 1.442695
    %v667 = vpow.pop %v666
    %v668 = vadd.f32 %v665, 1.0
    %v669 = vadd.f32 %v667, 1.0
    %v670 = vrcp.pop %v668
    %v671 = vmul.f32 1.0, %v670
    %v672 = vrcp.pop %v669
    %v673 = vmul.f32 1.0, %v672
    %v674 = vtanh.pop %v660
    %v675 = vtanh.pop %v661
    %v678 = vrot.slane %v514, 7
    %v679 = vrot.slane %v515, 7
    %v682 = vmul.f32 %v671, %v678
    %v683 = vmul.f32 %v673, %v679
    %686 = vrot.lane.b32.xlu0 %v674, 64
    %v687 = vpop.permute.xlu0 %686
    %688 = vrot.lane.b32.xlu0 %v675, 64
    %v689 = vpop.permute.xlu0 %688
    %v692 = vmul.f32 %v671, %v687
    %v693 = vmul.f32 %v673, %v689
    %696 = vrot.lane.b32.xlu0 %v692, 32
    %v697 = vpop.permute.xlu0 %696
    %698 = vrot.lane.b32.xlu0 %v693, 32
    %v699 = vpop.permute.xlu0 %698
    %v702 = vadd.f32 %v682, %v697
    %v703 = vadd.f32 %v683, %v699
    %v704 = vtanh.pop %v702
    %v705 = vtanh.pop %v703
    %708 = vrot.lane.b32.xlu0 %v704, 64
    %v709 = vpop.permute.xlu0 %708
    %710 = vrot.lane.b32.xlu0 %v705, 64
    %v711 = vpop.permute.xlu0 %710
    %v714 = vmul.f32 %v671, %v709
    %v715 = vmul.f32 %v673, %v711
    %v716 = vpack.c.bf16 %v714, %v714
    %v717 = vpack.c.bf16 %v715, %v715
    %v720 = vunpack.c.l.b16 %v716
    %v721 = vunpack.c.l.b16 %v717
    %v722 = vrot.slane %v720, 2
    %v723 = vrot.slane %v721, 1
    %v724 = vsel %vm327, %v723, %v722
    %v725 = vpack.c.b16 %v724, %v724
    %726 = vrot.lane.b32.xlu0 %v725, 32
    %v727 = vpop.permute.xlu0 %726
    %v729 = vsel %vm226, %v727, 0
    %731 = vmatprep.subr.bf16.mxu0 0
    %732 = vmatpush1.bf16.msra.mxu0 0
    %733 = vmatprep.subr.bf16.mxu0 0
    %734 = vmatpush1.bf16.msra.mxu0 0
    %735 = vmatprep.subr.bf16.mxu0 0
    %736 = vmatpush1.bf16.msra.mxu0 0
    %737 = vmatprep.subr.bf16.mxu0 0
    %738 = vmatpush1.bf16.msra.mxu0 0
    %739 = vmatprep.subr.bf16.mxu0 0
    %740 = vmatpush1.bf16.msra.mxu0 0
    %741 = vmatprep.subr.bf16.mxu0 0
    %742 = vmatpush1.bf16.msra.mxu0 0
    %743 = vmatprep.subr.bf16.mxu0 %v347
    %744 = vmatpush1.bf16.msra.mxu0 %v346
    %745 = vmatprep.subr.bf16.mxu0 %v345
    %746 = vmatpush1.bf16.msra.mxu0 %v344
    %747 = vmatprep.subr.bf16.mxu0 0
    %748 = vmatpush2.bf16.msra.mxu0 0
    %749 = vmatprep.subr.bf16.mxu0 0
    %750 = vmatpush2.bf16.msra.mxu0 0
    %751 = vmatprep.subr.bf16.mxu0 0
    %752 = vmatpush2.bf16.msra.mxu0 0
    %753 = vmatprep.subr.bf16.mxu0 0
    %754 = vmatpush2.bf16.msra.mxu0 0
    %755 = vmatprep.subr.bf16.mxu0 0
    %756 = vmatpush2.bf16.msra.mxu0 0
    %757 = vmatprep.subr.bf16.mxu0 0
    %758 = vmatpush2.bf16.msra.mxu0 0
    %759 = vmatprep.subr.bf16.mxu0 0
    %760 = vmatpush2.bf16.msra.mxu0 0
    %761 = vmatprep.subr.bf16.mxu0 0
    %762 = vmatpush2.bf16.msra.mxu0 0
    %763 = vmatprep.mubr.bf16.mxu0 0
    %764 = vmatmul.mubr.bf16.gmra.mxu0 %v729
    %v765 = vpop.f32.mrf.mxu0
    %v766 = vadd.f32 0.0, %v765
    %v767 = vpop.f32.mrf.mxu0
    %v768 = vadd.f32 0.0, %v767
    %v769 = vpop.f32.mrf.mxu0
    %v770 = vpop.f32.mrf.mxu0
    %771 = vdwg.mxu0
    %v772 = vadd.f32 %v768, %v650
    %v773 = vxor.u32 %v772, 2147483648
    %v774 = vmul.f32 %v773, 1.442695
    %v775 = vpow.pop %v774
    %v776 = vadd.f32 %v775, 1.0
    %v777 = vrcp.pop %v776
    %v778 = vmul.f32 1.0, %v777
    %v779 = vtanh.pop %v772
    %v780 = vmul.f32 %v778, %v601
    %782 = vrot.lane.b32.xlu0 %v779, 64
    %v783 = vpop.permute.xlu0 %782
    %v785 = vmul.f32 %v778, %v783
    %787 = vrot.lane.b32.xlu0 %v785, 32
    %v788 = vpop.permute.xlu0 %787
    %v790 = vadd.f32 %v780, %v788
    %v791 = vtanh.pop %v790
    %793 = vrot.lane.b32.xlu0 %v791, 64
    %v794 = vpop.permute.xlu0 %793
    %v796 = vmul.f32 %v778, %v794
    %v797 = vpack.c.bf16 %v796, %v796
    %799 = vrot.lane.b32.xlu0 %v797, 32
    %v800 = vpop.permute.xlu0 %799
    %v802 = vsel %vm226, %v800, 0
    %804 = vmatprep.subr.bf16.mxu0 0
    %805 = vmatpush1.bf16.msra.mxu0 0
    %806 = vmatprep.subr.bf16.mxu0 0
    %807 = vmatpush1.bf16.msra.mxu0 0
    %808 = vmatprep.subr.bf16.mxu0 0
    %809 = vmatpush1.bf16.msra.mxu0 0
    %810 = vmatprep.subr.bf16.mxu0 0
    %811 = vmatpush1.bf16.msra.mxu0 0
    %812 = vmatprep.subr.bf16.mxu0 0
    %813 = vmatpush1.bf16.msra.mxu0 0
    %814 = vmatprep.subr.bf16.mxu0 0
    %815 = vmatpush1.bf16.msra.mxu0 0
    %816 = vmatprep.subr.bf16.mxu0 0
    %817 = vmatpush1.bf16.msra.mxu0 %v223
    %818 = vmatprep.subr.bf16.mxu0 0
    %819 = vmatpush1.bf16.msra.mxu0 %v222
    %820 = vmatprep.subr.bf16.mxu0 0
    %821 = vmatpush2.bf16.msra.mxu0 0
    %822 = vmatprep.subr.bf16.mxu0 0
    %823 = vmatpush2.bf16.msra.mxu0 0
    %824 = vmatprep.subr.bf16.mxu0 0
    %825 = vmatpush2.bf16.msra.mxu0 0
    %826 = vmatprep.subr.bf16.mxu0 0
    %827 = vmatpush2.bf16.msra.mxu0 0
    %828 = vmatprep.subr.bf16.mxu0 0
    %829 = vmatpush2.bf16.msra.mxu0 0
    %830 = vmatprep.subr.bf16.mxu0 0
    %831 = vmatpush2.bf16.msra.mxu0 0
    %832 = vmatprep.subr.bf16.mxu0 0
    %833 = vmatpush2.bf16.msra.mxu0 0
    %834 = vmatprep.subr.bf16.mxu0 0
    %835 = vmatpush2.bf16.msra.mxu0 0
    %836 = vmatprep.mubr.bf16.mxu0 0
    %837 = vmatmul.mubr.bf16.gmra.mxu0 %v802
    %v838 = vpop.f32.mrf.mxu0
    %v839 = vadd.f32 %v212, %v838
    %v840 = vpop.f32.mrf.mxu0
    %v841 = vpop.f32.mrf.mxu0
    %v842 = vpop.f32.mrf.mxu0
    %843 = vdwg.mxu0
    %v845 = vrot.slane %v766, 5
    %v846 = vrot.slane %v766, 6
    %v849 = vadd.f32 %v197, %v845
    %v850 = vadd.f32 %v198, %v846
    %v851 = vxor.u32 %v849, 2147483648
    %v852 = vxor.u32 %v850, 2147483648
    %v853 = vmul.f32 %v851, 1.442695
    %v854 = vpow.pop %v853
    %v855 = vmul.f32 %v852, 1.442695
    %v856 = vpow.pop %v855
    %v857 = vadd.f32 %v854, 1.0
    %v858 = vadd.f32 %v856, 1.0
    %v859 = vrcp.pop %v857
    %v860 = vmul.f32 1.0, %v859
    %v861 = vrcp.pop %v858
    %v862 = vmul.f32 1.0, %v861
    %v863 = vtanh.pop %v849
    %v864 = vtanh.pop %v850
    %v867 = vrot.slane %v702, 7
    %v868 = vrot.slane %v703, 7
    %v871 = vmul.f32 %v860, %v867
    %v872 = vmul.f32 %v862, %v868
    %875 = vrot.lane.b32.xlu0 %v863, 64
    %v876 = vpop.permute.xlu0 %875
    %877 = vrot.lane.b32.xlu0 %v864, 64
    %v878 = vpop.permute.xlu0 %877
    %v881 = vmul.f32 %v860, %v876
    %v882 = vmul.f32 %v862, %v878
    %885 = vrot.lane.b32.xlu0 %v881, 32
    %v886 = vpop.permute.xlu0 %885
    %887 = vrot.lane.b32.xlu0 %v882, 32
    %v888 = vpop.permute.xlu0 %887
    %v891 = vadd.f32 %v871, %v886
    %v892 = vadd.f32 %v872, %v888
    %v893 = vtanh.pop %v891
    %v894 = vtanh.pop %v892
    %897 = vrot.lane.b32.xlu0 %v893, 64
    %v898 = vpop.permute.xlu0 %897
    %899 = vrot.lane.b32.xlu0 %v894, 64
    %v900 = vpop.permute.xlu0 %899
    %v903 = vmul.f32 %v860, %v898
    %v904 = vmul.f32 %v862, %v900
    %v905 = vpack.c.bf16 %v903, %v903
    %v906 = vpack.c.bf16 %v904, %v904
    %v909 = vunpack.c.l.b16 %v905
    %v910 = vunpack.c.l.b16 %v906
    %v911 = vrot.slane %v909, 3
    %v912 = vrot.slane %v910, 2
    %v913 = vsel %vm327, %v912, %v911
    %v914 = vpack.c.b16 %v913, %v913
    %915 = vrot.lane.b32.xlu0 %v914, 32
    %v916 = vpop.permute.xlu0 %915
    %v918 = vsel %vm226, %v916, 0
    %920 = vmatprep.subr.bf16.mxu0 0
    %921 = vmatpush1.bf16.msra.mxu0 0
    %922 = vmatprep.subr.bf16.mxu0 0
    %923 = vmatpush1.bf16.msra.mxu0 0
    %924 = vmatprep.subr.bf16.mxu0 0
    %925 = vmatpush1.bf16.msra.mxu0 0
    %926 = vmatprep.subr.bf16.mxu0 0
    %927 = vmatpush1.bf16.msra.mxu0 0
    %928 = vmatprep.subr.bf16.mxu0 0
    %929 = vmatpush1.bf16.msra.mxu0 0
    %930 = vmatprep.subr.bf16.mxu0 0
    %931 = vmatpush1.bf16.msra.mxu0 0
    %932 = vmatprep.subr.bf16.mxu0 %v347
    %933 = vmatpush1.bf16.msra.mxu0 %v346
    %934 = vmatprep.subr.bf16.mxu0 %v345
    %935 = vmatpush1.bf16.msra.mxu0 %v344
    %936 = vmatprep.subr.bf16.mxu0 0
    %937 = vmatpush2.bf16.msra.mxu0 0
    %938 = vmatprep.subr.bf16.mxu0 0
    %939 = vmatpush2.bf16.msra.mxu0 0
    %940 = vmatprep.subr.bf16.mxu0 0
    %941 = vmatpush2.bf16.msra.mxu0 0
    %942 = vmatprep.subr.bf16.mxu0 0
    %943 = vmatpush2.bf16.msra.mxu0 0
    %944 = vmatprep.subr.bf16.mxu0 0
    %945 = vmatpush2.bf16.msra.mxu0 0
    %946 = vmatprep.subr.bf16.mxu0 0
    %947 = vmatpush2.bf16.msra.mxu0 0
    %948 = vmatprep.subr.bf16.mxu0 0
    %949 = vmatpush2.bf16.msra.mxu0 0
    %950 = vmatprep.subr.bf16.mxu0 0
    %951 = vmatpush2.bf16.msra.mxu0 0
    %952 = vmatprep.mubr.bf16.mxu0 0
    %953 = vmatmul.mubr.bf16.gmra.mxu0 %v918
    %v954 = vpop.f32.mrf.mxu0
    %v955 = vadd.f32 0.0, %v954
    %v956 = vpop.f32.mrf.mxu0
    %v957 = vadd.f32 0.0, %v956
    %v958 = vpop.f32.mrf.mxu0
    %v959 = vpop.f32.mrf.mxu0
    %960 = vdwg.mxu0
    %v961 = vadd.f32 %v957, %v839
    %v962 = vxor.u32 %v961, 2147483648
    %v963 = vmul.f32 %v962, 1.442695
    %v964 = vpow.pop %v963
    %v965 = vadd.f32 %v964, 1.0
    %v966 = vrcp.pop %v965
    %v967 = vmul.f32 1.0, %v966
    %v968 = vtanh.pop %v961
    %v969 = vmul.f32 %v967, %v790
    %971 = vrot.lane.b32.xlu0 %v968, 64
    %v972 = vpop.permute.xlu0 %971
    %v974 = vmul.f32 %v967, %v972
    %976 = vrot.lane.b32.xlu0 %v974, 32
    %v977 = vpop.permute.xlu0 %976
    %v979 = vadd.f32 %v969, %v977
    %v980 = vtanh.pop %v979
    %982 = vrot.lane.b32.xlu0 %v980, 64
    %v983 = vpop.permute.xlu0 %982
    %v985 = vmul.f32 %v967, %v983
    %v986 = vpack.c.bf16 %v985, %v985
    %988 = vrot.lane.b32.xlu0 %v986, 32
    %v989 = vpop.permute.xlu0 %988
    %v991 = vsel %vm226, %v989, 0
    %993 = vmatprep.subr.bf16.mxu0 0
    %994 = vmatpush1.bf16.msra.mxu0 0
    %995 = vmatprep.subr.bf16.mxu0 0
    %996 = vmatpush1.bf16.msra.mxu0 0
    %997 = vmatprep.subr.bf16.mxu0 0
    %998 = vmatpush1.bf16.msra.mxu0 0
    %999 = vmatprep.subr.bf16.mxu0 0
    %1000 = vmatpush1.bf16.msra.mxu0 0
    %1001 = vmatprep.subr.bf16.mxu0 0
    %1002 = vmatpush1.bf16.msra.mxu0 0
    %1003 = vmatprep.subr.bf16.mxu0 0
    %1004 = vmatpush1.bf16.msra.mxu0 0
    %1005 = vmatprep.subr.bf16.mxu0 0
    %1006 = vmatpush1.bf16.msra.mxu0 %v223
    %1007 = vmatprep.subr.bf16.mxu0 0
    %1008 = vmatpush1.bf16.msra.mxu0 %v222
    %1009 = vmatprep.subr.bf16.mxu0 0
    %1010 = vmatpush2.bf16.msra.mxu0 0
    %1011 = vmatprep.subr.bf16.mxu0 0
    %1012 = vmatpush2.bf16.msra.mxu0 0
    %1013 = vmatprep.subr.bf16.mxu0 0
    %1014 = vmatpush2.bf16.msra.mxu0 0
    %1015 = vmatprep.subr.bf16.mxu0 0
    %1016 = vmatpush2.bf16.msra.mxu0 0
    %1017 = vmatprep.subr.bf16.mxu0 0
    %1018 = vmatpush2.bf16.msra.mxu0 0
    %1019 = vmatprep.subr.bf16.mxu0 0
    %1020 = vmatpush2.bf16.msra.mxu0 0
    %1021 = vmatprep.subr.bf16.mxu0 0
    %1022 = vmatpush2.bf16.msra.mxu0 0
    %1023 = vmatprep.subr.bf16.mxu0 0
    %1024 = vmatpush2.bf16.msra.mxu0 0
    %1025 = vmatprep.mubr.bf16.mxu0 0
    %1026 = vmatmul.mubr.bf16.gmra.mxu0 %v991
    %v1027 = vpop.f32.mrf.mxu0
    %v1028 = vadd.f32 %v212, %v1027
    %v1029 = vpop.f32.mrf.mxu0
    %v1030 = vpop.f32.mrf.mxu0
    %v1031 = vpop.f32.mrf.mxu0
    %1032 = vdwg.mxu0
    %v1034 = vrot.slane %v955, 4
    %v1035 = vrot.slane %v955, 5
    %v1038 = vadd.f32 %v197, %v1034
    %v1039 = vadd.f32 %v198, %v1035
    %v1040 = vxor.u32 %v1038, 2147483648
    %v1041 = vxor.u32 %v1039, 2147483648
    %v1042 = vmul.f32 %v1040, 1.442695
    %v1043 = vpow.pop %v1042
    %v1044 = vmul.f32 %v1041, 1.442695
    %v1045 = vpow.pop %v1044
    %v1046 = vadd.f32 %v1043, 1.0
    %v1047 = vadd.f32 %v1045, 1.0
    %v1048 = vrcp.pop %v1046
    %v1049 = vmul.f32 1.0, %v1048
    %v1050 = vrcp.pop %v1047
    %v1051 = vmul.f32 1.0, %v1050
    %v1052 = vtanh.pop %v1038
    %v1053 = vtanh.pop %v1039
    %v1056 = vrot.slane %v891, 7
    %v1057 = vrot.slane %v892, 7
    %v1060 = vmul.f32 %v1049, %v1056
    %v1061 = vmul.f32 %v1051, %v1057
    %1064 = vrot.lane.b32.xlu0 %v1052, 64
    %v1065 = vpop.permute.xlu0 %1064
    %1066 = vrot.lane.b32.xlu0 %v1053, 64
    %v1067 = vpop.permute.xlu0 %1066
    %v1070 = vmul.f32 %v1049, %v1065
    %v1071 = vmul.f32 %v1051, %v1067
    %1074 = vrot.lane.b32.xlu0 %v1070, 32
    %v1075 = vpop.permute.xlu0 %1074
    %1076 = vrot.lane.b32.xlu0 %v1071, 32
    %v1077 = vpop.permute.xlu0 %1076
    %v1080 = vadd.f32 %v1060, %v1075
    %v1081 = vadd.f32 %v1061, %v1077
    %v1082 = vtanh.pop %v1080
    %v1083 = vtanh.pop %v1081
    %1086 = vrot.lane.b32.xlu0 %v1082, 64
    %v1087 = vpop.permute.xlu0 %1086
    %1088 = vrot.lane.b32.xlu0 %v1083, 64
    %v1089 = vpop.permute.xlu0 %1088
    %v1092 = vmul.f32 %v1049, %v1087
    %v1093 = vmul.f32 %v1051, %v1089
    %v1094 = vpack.c.bf16 %v1092, %v1092
    %v1095 = vpack.c.bf16 %v1093, %v1093
    %v1098 = vunpack.c.l.b16 %v1094
    %v1099 = vunpack.c.l.b16 %v1095
    %v1100 = vrot.slane %v1098, 4
    %v1101 = vrot.slane %v1099, 3
    %v1102 = vsel %vm327, %v1101, %v1100
    %v1103 = vpack.c.b16 %v1102, %v1102
    %1104 = vrot.lane.b32.xlu0 %v1103, 32
    %v1105 = vpop.permute.xlu0 %1104
    %v1107 = vsel %vm226, %v1105, 0
    %1109 = vmatprep.subr.bf16.mxu0 0
    %1110 = vmatpush1.bf16.msra.mxu0 0
    %1111 = vmatprep.subr.bf16.mxu0 0
    %1112 = vmatpush1.bf16.msra.mxu0 0
    %1113 = vmatprep.subr.bf16.mxu0 0
    %1114 = vmatpush1.bf16.msra.mxu0 0
    %1115 = vmatprep.subr.bf16.mxu0 0
    %1116 = vmatpush1.bf16.msra.mxu0 0
    %1117 = vmatprep.subr.bf16.mxu0 0
    %1118 = vmatpush1.bf16.msra.mxu0 0
    %1119 = vmatprep.subr.bf16.mxu0 0
    %1120 = vmatpush1.bf16.msra.mxu0 0
    %1121 = vmatprep.subr.bf16.mxu0 %v347
    %1122 = vmatpush1.bf16.msra.mxu0 %v346
    %1123 = vmatprep.subr.bf16.mxu0 %v345
    %1124 = vmatpush1.bf16.msra.mxu0 %v344
    %1125 = vmatprep.subr.bf16.mxu0 0
    %1126 = vmatpush2.bf16.msra.mxu0 0
    %1127 = vmatprep.subr.bf16.mxu0 0
    %1128 = vmatpush2.bf16.msra.mxu0 0
    %1129 = vmatprep.subr.bf16.mxu0 0
    %1130 = vmatpush2.bf16.msra.mxu0 0
    %1131 = vmatprep.subr.bf16.mxu0 0
    %1132 = vmatpush2.bf16.msra.mxu0 0
    %1133 = vmatprep.subr.bf16.mxu0 0
    %1134 = vmatpush2.bf16.msra.mxu0 0
    %1135 = vmatprep.subr.bf16.mxu0 0
    %1136 = vmatpush2.bf16.msra.mxu0 0
    %1137 = vmatprep.subr.bf16.mxu0 0
    %1138 = vmatpush2.bf16.msra.mxu0 0
    %1139 = vmatprep.subr.bf16.mxu0 0
    %1140 = vmatpush2.bf16.msra.mxu0 0
    %1141 = vmatprep.mubr.bf16.mxu0 0
    %1142 = vmatmul.mubr.bf16.gmra.mxu0 %v1107
    %v1143 = vpop.f32.mrf.mxu0
    %v1144 = vadd.f32 0.0, %v1143
    %v1145 = vpop.f32.mrf.mxu0
    %v1146 = vadd.f32 0.0, %v1145
    %v1147 = vpop.f32.mrf.mxu0
    %v1148 = vpop.f32.mrf.mxu0
    %1149 = vdwg.mxu0
    %v1150 = vadd.f32 %v1146, %v1028
    %v1151 = vxor.u32 %v1150, 2147483648
    %v1152 = vmul.f32 %v1151, 1.442695
    %v1153 = vpow.pop %v1152
    %v1154 = vadd.f32 %v1153, 1.0
    %v1155 = vrcp.pop %v1154
    %v1156 = vmul.f32 1.0, %v1155
    %v1157 = vtanh.pop %v1150
    %v1158 = vmul.f32 %v1156, %v979
    %1160 = vrot.lane.b32.xlu0 %v1157, 64
    %v1161 = vpop.permute.xlu0 %1160
    %v1163 = vmul.f32 %v1156, %v1161
    %1165 = vrot.lane.b32.xlu0 %v1163, 32
    %v1166 = vpop.permute.xlu0 %1165
    %v1168 = vadd.f32 %v1158, %v1166
    %v1169 = vtanh.pop %v1168
    %1171 = vrot.lane.b32.xlu0 %v1169, 64
    %v1172 = vpop.permute.xlu0 %1171
    %v1174 = vmul.f32 %v1156, %v1172
    %v1175 = vpack.c.bf16 %v1174, %v1174
    %1177 = vrot.lane.b32.xlu0 %v1175, 32
    %v1178 = vpop.permute.xlu0 %1177
    %v1180 = vsel %vm226, %v1178, 0
    %1182 = vmatprep.subr.bf16.mxu0 0
    %1183 = vmatpush1.bf16.msra.mxu0 0
    %1184 = vmatprep.subr.bf16.mxu0 0
    %1185 = vmatpush1.bf16.msra.mxu0 0
    %1186 = vmatprep.subr.bf16.mxu0 0
    %1187 = vmatpush1.bf16.msra.mxu0 0
    %1188 = vmatprep.subr.bf16.mxu0 0
    %1189 = vmatpush1.bf16.msra.mxu0 0
    %1190 = vmatprep.subr.bf16.mxu0 0
    %1191 = vmatpush1.bf16.msra.mxu0 0
    %1192 = vmatprep.subr.bf16.mxu0 0
    %1193 = vmatpush1.bf16.msra.mxu0 0
    %1194 = vmatprep.subr.bf16.mxu0 0
    %1195 = vmatpush1.bf16.msra.mxu0 %v223
    %1196 = vmatprep.subr.bf16.mxu0 0
    %1197 = vmatpush1.bf16.msra.mxu0 %v222
    %1198 = vmatprep.subr.bf16.mxu0 0
    %1199 = vmatpush2.bf16.msra.mxu0 0
    %1200 = vmatprep.subr.bf16.mxu0 0
    %1201 = vmatpush2.bf16.msra.mxu0 0
    %1202 = vmatprep.subr.bf16.mxu0 0
    %1203 = vmatpush2.bf16.msra.mxu0 0
    %1204 = vmatprep.subr.bf16.mxu0 0
    %1205 = vmatpush2.bf16.msra.mxu0 0
    %1206 = vmatprep.subr.bf16.mxu0 0
    %1207 = vmatpush2.bf16.msra.mxu0 0
    %1208 = vmatprep.subr.bf16.mxu0 0
    %1209 = vmatpush2.bf16.msra.mxu0 0
    %1210 = vmatprep.subr.bf16.mxu0 0
    %1211 = vmatpush2.bf16.msra.mxu0 0
    %1212 = vmatprep.subr.bf16.mxu0 0
    %1213 = vmatpush2.bf16.msra.mxu0 0
    %1214 = vmatprep.mubr.bf16.mxu0 0
    %1215 = vmatmul.mubr.bf16.gmra.mxu0 %v1180
    %v1216 = vpop.f32.mrf.mxu0
    %v1217 = vadd.f32 %v212, %v1216
    %v1218 = vpop.f32.mrf.mxu0
    %v1219 = vpop.f32.mrf.mxu0
    %v1220 = vpop.f32.mrf.mxu0
    %1221 = vdwg.mxu0
    %v1223 = vrot.slane %v1144, 3
    %v1224 = vrot.slane %v1144, 4
    %v1227 = vadd.f32 %v197, %v1223
    %v1228 = vadd.f32 %v198, %v1224
    %v1229 = vxor.u32 %v1227, 2147483648
    %v1230 = vxor.u32 %v1228, 2147483648
    %v1231 = vmul.f32 %v1229, 1.442695
    %v1232 = vpow.pop %v1231
    %v1233 = vmul.f32 %v1230, 1.442695
    %v1234 = vpow.pop %v1233
    %v1235 = vadd.f32 %v1232, 1.0
    %v1236 = vadd.f32 %v1234, 1.0
    %v1237 = vrcp.pop %v1235
    %v1238 = vmul.f32 1.0, %v1237
    %v1239 = vrcp.pop %v1236
    %v1240 = vmul.f32 1.0, %v1239
    %v1241 = vtanh.pop %v1227
    %v1242 = vtanh.pop %v1228
    %v1245 = vrot.slane %v1080, 7
    %v1246 = vrot.slane %v1081, 7
    %v1249 = vmul.f32 %v1238, %v1245
    %v1250 = vmul.f32 %v1240, %v1246
    %1253 = vrot.lane.b32.xlu0 %v1241, 64
    %v1254 = vpop.permute.xlu0 %1253
    %1255 = vrot.lane.b32.xlu0 %v1242, 64
    %v1256 = vpop.permute.xlu0 %1255
    %v1259 = vmul.f32 %v1238, %v1254
    %v1260 = vmul.f32 %v1240, %v1256
    %1263 = vrot.lane.b32.xlu0 %v1259, 32
    %v1264 = vpop.permute.xlu0 %1263
    %1265 = vrot.lane.b32.xlu0 %v1260, 32
    %v1266 = vpop.permute.xlu0 %1265
    %v1269 = vadd.f32 %v1249, %v1264
    %v1270 = vadd.f32 %v1250, %v1266
    %v1271 = vtanh.pop %v1269
    %v1272 = vtanh.pop %v1270
    %1275 = vrot.lane.b32.xlu0 %v1271, 64
    %v1276 = vpop.permute.xlu0 %1275
    %1277 = vrot.lane.b32.xlu0 %v1272, 64
    %v1278 = vpop.permute.xlu0 %1277
    %v1281 = vmul.f32 %v1238, %v1276
    %v1282 = vmul.f32 %v1240, %v1278
    %v1283 = vpack.c.bf16 %v1281, %v1281
    %v1284 = vpack.c.bf16 %v1282, %v1282
    %v1287 = vunpack.c.l.b16 %v1283
    %v1288 = vunpack.c.l.b16 %v1284
    %v1289 = vrot.slane %v1287, 5
    %v1290 = vrot.slane %v1288, 4
    %v1291 = vsel %vm327, %v1290, %v1289
    %v1292 = vpack.c.b16 %v1291, %v1291
    %1293 = vrot.lane.b32.xlu0 %v1292, 32
    %v1294 = vpop.permute.xlu0 %1293
    %v1296 = vsel %vm226, %v1294, 0
    %1298 = vmatprep.subr.bf16.mxu0 0
    %1299 = vmatpush1.bf16.msra.mxu0 0
    %1300 = vmatprep.subr.bf16.mxu0 0
    %1301 = vmatpush1.bf16.msra.mxu0 0
    %1302 = vmatprep.subr.bf16.mxu0 0
    %1303 = vmatpush1.bf16.msra.mxu0 0
    %1304 = vmatprep.subr.bf16.mxu0 0
    %1305 = vmatpush1.bf16.msra.mxu0 0
    %1306 = vmatprep.subr.bf16.mxu0 0
    %1307 = vmatpush1.bf16.msra.mxu0 0
    %1308 = vmatprep.subr.bf16.mxu0 0
    %1309 = vmatpush1.bf16.msra.mxu0 0
    %1310 = vmatprep.subr.bf16.mxu0 %v347
    %1311 = vmatpush1.bf16.msra.mxu0 %v346
    %1312 = vmatprep.subr.bf16.mxu0 %v345
    %1313 = vmatpush1.bf16.msra.mxu0 %v344
    %1314 = vmatprep.subr.bf16.mxu0 0
    %1315 = vmatpush2.bf16.msra.mxu0 0
    %1316 = vmatprep.subr.bf16.mxu0 0
    %1317 = vmatpush2.bf16.msra.mxu0 0
    %1318 = vmatprep.subr.bf16.mxu0 0
    %1319 = vmatpush2.bf16.msra.mxu0 0
    %1320 = vmatprep.subr.bf16.mxu0 0
    %1321 = vmatpush2.bf16.msra.mxu0 0
    %1322 = vmatprep.subr.bf16.mxu0 0
    %1323 = vmatpush2.bf16.msra.mxu0 0
    %1324 = vmatprep.subr.bf16.mxu0 0
    %1325 = vmatpush2.bf16.msra.mxu0 0
    %1326 = vmatprep.subr.bf16.mxu0 0
    %1327 = vmatpush2.bf16.msra.mxu0 0
    %1328 = vmatprep.subr.bf16.mxu0 0
    %1329 = vmatpush2.bf16.msra.mxu0 0
    %1330 = vmatprep.mubr.bf16.mxu0 0
    %1331 = vmatmul.mubr.bf16.gmra.mxu0 %v1296
    %v1332 = vpop.f32.mrf.mxu0
    %v1333 = vadd.f32 0.0, %v1332
    %v1334 = vpop.f32.mrf.mxu0
    %v1335 = vadd.f32 0.0, %v1334
    %v1336 = vpop.f32.mrf.mxu0
    %v1337 = vpop.f32.mrf.mxu0
    %1338 = vdwg.mxu0
    %v1339 = vadd.f32 %v1335, %v1217
    %v1340 = vxor.u32 %v1339, 2147483648
    %v1341 = vmul.f32 %v1340, 1.442695
    %v1342 = vpow.pop %v1341
    %v1343 = vadd.f32 %v1342, 1.0
    %v1344 = vrcp.pop %v1343
    %v1345 = vmul.f32 1.0, %v1344
    %v1346 = vtanh.pop %v1339
    %v1347 = vmul.f32 %v1345, %v1168
    %1349 = vrot.lane.b32.xlu0 %v1346, 64
    %v1350 = vpop.permute.xlu0 %1349
    %v1352 = vmul.f32 %v1345, %v1350
    %1354 = vrot.lane.b32.xlu0 %v1352, 32
    %v1355 = vpop.permute.xlu0 %1354
    %v1357 = vadd.f32 %v1347, %v1355
    %v1358 = vtanh.pop %v1357
    %1360 = vrot.lane.b32.xlu0 %v1358, 64
    %v1361 = vpop.permute.xlu0 %1360
    %v1363 = vmul.f32 %v1345, %v1361
    %v1364 = vpack.c.bf16 %v1363, %v1363
    %1366 = vrot.lane.b32.xlu0 %v1364, 32
    %v1367 = vpop.permute.xlu0 %1366
    %v1369 = vsel %vm226, %v1367, 0
    %1371 = vmatprep.subr.bf16.mxu0 0
    %1372 = vmatpush1.bf16.msra.mxu0 0
    %1373 = vmatprep.subr.bf16.mxu0 0
    %1374 = vmatpush1.bf16.msra.mxu0 0
    %1375 = vmatprep.subr.bf16.mxu0 0
    %1376 = vmatpush1.bf16.msra.mxu0 0
    %1377 = vmatprep.subr.bf16.mxu0 0
    %1378 = vmatpush1.bf16.msra.mxu0 0
    %1379 = vmatprep.subr.bf16.mxu0 0
    %1380 = vmatpush1.bf16.msra.mxu0 0
    %1381 = vmatprep.subr.bf16.mxu0 0
    %1382 = vmatpush1.bf16.msra.mxu0 0
    %1383 = vmatprep.subr.bf16.mxu0 0
    %1384 = vmatpush1.bf16.msra.mxu0 %v223
    %1385 = vmatprep.subr.bf16.mxu0 0
    %1386 = vmatpush1.bf16.msra.mxu0 %v222
    %1387 = vmatprep.subr.bf16.mxu0 0
    %1388 = vmatpush2.bf16.msra.mxu0 0
    %1389 = vmatprep.subr.bf16.mxu0 0
    %1390 = vmatpush2.bf16.msra.mxu0 0
    %1391 = vmatprep.subr.bf16.mxu0 0
    %1392 = vmatpush2.bf16.msra.mxu0 0
    %1393 = vmatprep.subr.bf16.mxu0 0
    %1394 = vmatpush2.bf16.msra.mxu0 0
    %1395 = vmatprep.subr.bf16.mxu0 0
    %1396 = vmatpush2.bf16.msra.mxu0 0
    %1397 = vmatprep.subr.bf16.mxu0 0
    %1398 = vmatpush2.bf16.msra.mxu0 0
    %1399 = vmatprep.subr.bf16.mxu0 0
    %1400 = vmatpush2.bf16.msra.mxu0 0
    %1401 = vmatprep.subr.bf16.mxu0 0
    %1402 = vmatpush2.bf16.msra.mxu0 0
    %1403 = vmatprep.mubr.bf16.mxu0 0
    %1404 = vmatmul.mubr.bf16.gmra.mxu0 %v1369
    %v1405 = vpop.f32.mrf.mxu0
    %v1406 = vadd.f32 %v212, %v1405
    %v1407 = vpop.f32.mrf.mxu0
    %v1408 = vpop.f32.mrf.mxu0
    %v1409 = vpop.f32.mrf.mxu0
    %1410 = vdwg.mxu0
    %v1412 = vrot.slane %v1333, 2
    %v1413 = vrot.slane %v1333, 3
    %v1416 = vadd.f32 %v197, %v1412
    %v1417 = vadd.f32 %v198, %v1413
    %v1418 = vxor.u32 %v1416, 2147483648
    %v1419 = vxor.u32 %v1417, 2147483648
    %v1420 = vmul.f32 %v1418, 1.442695
    %v1421 = vpow.pop %v1420
    %v1422 = vmul.f32 %v1419, 1.442695
    %v1423 = vpow.pop %v1422
    %v1424 = vadd.f32 %v1421, 1.0
    %v1425 = vadd.f32 %v1423, 1.0
    %v1426 = vrcp.pop %v1424
    %v1427 = vmul.f32 1.0, %v1426
    %v1428 = vrcp.pop %v1425
    %v1429 = vmul.f32 1.0, %v1428
    %v1430 = vtanh.pop %v1416
    %v1431 = vtanh.pop %v1417
    %v1434 = vrot.slane %v1269, 7
    %v1435 = vrot.slane %v1270, 7
    %v1438 = vmul.f32 %v1427, %v1434
    %v1439 = vmul.f32 %v1429, %v1435
    %1442 = vrot.lane.b32.xlu0 %v1430, 64
    %v1443 = vpop.permute.xlu0 %1442
    %1444 = vrot.lane.b32.xlu0 %v1431, 64
    %v1445 = vpop.permute.xlu0 %1444
    %v1448 = vmul.f32 %v1427, %v1443
    %v1449 = vmul.f32 %v1429, %v1445
    %1452 = vrot.lane.b32.xlu0 %v1448, 32
    %v1453 = vpop.permute.xlu0 %1452
    %1454 = vrot.lane.b32.xlu0 %v1449, 32
    %v1455 = vpop.permute.xlu0 %1454
    %v1458 = vadd.f32 %v1438, %v1453
    %v1459 = vadd.f32 %v1439, %v1455
    %v1460 = vtanh.pop %v1458
    %v1461 = vtanh.pop %v1459
    %1464 = vrot.lane.b32.xlu0 %v1460, 64
    %v1465 = vpop.permute.xlu0 %1464
    %1466 = vrot.lane.b32.xlu0 %v1461, 64
    %v1467 = vpop.permute.xlu0 %1466
    %v1470 = vmul.f32 %v1427, %v1465
    %v1471 = vmul.f32 %v1429, %v1467
    %v1472 = vpack.c.bf16 %v1470, %v1470
    %v1473 = vpack.c.bf16 %v1471, %v1471
    %v1476 = vunpack.c.l.b16 %v1472
    %v1477 = vunpack.c.l.b16 %v1473
    %v1478 = vrot.slane %v1476, 6
    %v1479 = vrot.slane %v1477, 5
    %v1480 = vsel %vm327, %v1479, %v1478
    %v1481 = vpack.c.b16 %v1480, %v1480
    %1482 = vrot.lane.b32.xlu0 %v1481, 32
    %v1483 = vpop.permute.xlu0 %1482
    %v1485 = vsel %vm226, %v1483, 0
    %1487 = vmatprep.subr.bf16.mxu0 0
    %1488 = vmatpush1.bf16.msra.mxu0 0
    %1489 = vmatprep.subr.bf16.mxu0 0
    %1490 = vmatpush1.bf16.msra.mxu0 0
    %1491 = vmatprep.subr.bf16.mxu0 0
    %1492 = vmatpush1.bf16.msra.mxu0 0
    %1493 = vmatprep.subr.bf16.mxu0 0
    %1494 = vmatpush1.bf16.msra.mxu0 0
    %1495 = vmatprep.subr.bf16.mxu0 0
    %1496 = vmatpush1.bf16.msra.mxu0 0
    %1497 = vmatprep.subr.bf16.mxu0 0
    %1498 = vmatpush1.bf16.msra.mxu0 0
    %1499 = vmatprep.subr.bf16.mxu0 %v347
    %1500 = vmatpush1.bf16.msra.mxu0 %v346
    %1501 = vmatprep.subr.bf16.mxu0 %v345
    %1502 = vmatpush1.bf16.msra.mxu0 %v344
    %1503 = vmatprep.subr.bf16.mxu0 0
    %1504 = vmatpush2.bf16.msra.mxu0 0
    %1505 = vmatprep.subr.bf16.mxu0 0
    %1506 = vmatpush2.bf16.msra.mxu0 0
    %1507 = vmatprep.subr.bf16.mxu0 0
    %1508 = vmatpush2.bf16.msra.mxu0 0
    %1509 = vmatprep.subr.bf16.mxu0 0
    %1510 = vmatpush2.bf16.msra.mxu0 0
    %1511 = vmatprep.subr.bf16.mxu0 0
    %1512 = vmatpush2.bf16.msra.mxu0 0
    %1513 = vmatprep.subr.bf16.mxu0 0
    %1514 = vmatpush2.bf16.msra.mxu0 0
    %1515 = vmatprep.subr.bf16.mxu0 0
    %1516 = vmatpush2.bf16.msra.mxu0 0
    %1517 = vmatprep.subr.bf16.mxu0 0
    %1518 = vmatpush2.bf16.msra.mxu0 0
    %1519 = vmatprep.mubr.bf16.mxu0 0
    %1520 = vmatmul.mubr.bf16.gmra.mxu0 %v1485
    %v1521 = vpop.f32.mrf.mxu0
    %v1522 = vadd.f32 0.0, %v1521
    %v1523 = vpop.f32.mrf.mxu0
    %v1524 = vadd.f32 0.0, %v1523
    %v1525 = vpop.f32.mrf.mxu0
    %v1526 = vpop.f32.mrf.mxu0
    %1527 = vdwg.mxu0
    %v1528 = vadd.f32 %v1524, %v1406
    %v1529 = vxor.u32 %v1528, 2147483648
    %v1530 = vmul.f32 %v1529, 1.442695
    %v1531 = vpow.pop %v1530
    %v1532 = vadd.f32 %v1531, 1.0
    %v1533 = vrcp.pop %v1532
    %v1534 = vmul.f32 1.0, %v1533
    %v1535 = vtanh.pop %v1528
    %v1536 = vmul.f32 %v1534, %v1357
    %1538 = vrot.lane.b32.xlu0 %v1535, 64
    %v1539 = vpop.permute.xlu0 %1538
    %v1541 = vmul.f32 %v1534, %v1539
    %1543 = vrot.lane.b32.xlu0 %v1541, 32
    %v1544 = vpop.permute.xlu0 %1543
    %v1546 = vadd.f32 %v1536, %v1544
    %v1547 = vtanh.pop %v1546
    %1549 = vrot.lane.b32.xlu0 %v1547, 64
    %v1550 = vpop.permute.xlu0 %1549
    %v1552 = vmul.f32 %v1534, %v1550
    %v1553 = vpack.c.bf16 %v1552, %v1552
    %1555 = vrot.lane.b32.xlu0 %v1553, 32
    %v1556 = vpop.permute.xlu0 %1555
    %v1558 = vsel %vm226, %v1556, 0
    %1560 = vmatprep.subr.bf16.mxu0 0
    %1561 = vmatpush1.bf16.msra.mxu0 0
    %1562 = vmatprep.subr.bf16.mxu0 0
    %1563 = vmatpush1.bf16.msra.mxu0 0
    %1564 = vmatprep.subr.bf16.mxu0 0
    %1565 = vmatpush1.bf16.msra.mxu0 0
    %1566 = vmatprep.subr.bf16.mxu0 0
    %1567 = vmatpush1.bf16.msra.mxu0 0
    %1568 = vmatprep.subr.bf16.mxu0 0
    %1569 = vmatpush1.bf16.msra.mxu0 0
    %1570 = vmatprep.subr.bf16.mxu0 0
    %1571 = vmatpush1.bf16.msra.mxu0 0
    %1572 = vmatprep.subr.bf16.mxu0 0
    %1573 = vmatpush1.bf16.msra.mxu0 %v223
    %1574 = vmatprep.subr.bf16.mxu0 0
    %1575 = vmatpush1.bf16.msra.mxu0 %v222
    %1576 = vmatprep.subr.bf16.mxu0 0
    %1577 = vmatpush2.bf16.msra.mxu0 0
    %1578 = vmatprep.subr.bf16.mxu0 0
    %1579 = vmatpush2.bf16.msra.mxu0 0
    %1580 = vmatprep.subr.bf16.mxu0 0
    %1581 = vmatpush2.bf16.msra.mxu0 0
    %1582 = vmatprep.subr.bf16.mxu0 0
    %1583 = vmatpush2.bf16.msra.mxu0 0
    %1584 = vmatprep.subr.bf16.mxu0 0
    %1585 = vmatpush2.bf16.msra.mxu0 0
    %1586 = vmatprep.subr.bf16.mxu0 0
    %1587 = vmatpush2.bf16.msra.mxu0 0
    %1588 = vmatprep.subr.bf16.mxu0 0
    %1589 = vmatpush2.bf16.msra.mxu0 0
    %1590 = vmatprep.subr.bf16.mxu0 0
    %1591 = vmatpush2.bf16.msra.mxu0 0
    %1592 = vmatprep.mubr.bf16.mxu0 0
    %1593 = vmatmul.mubr.bf16.gmra.mxu0 %v1558
    %v1594 = vpop.f32.mrf.mxu0
    %v1595 = vadd.f32 %v212, %v1594
    %v1596 = vpop.f32.mrf.mxu0
    %v1597 = vpop.f32.mrf.mxu0
    %v1598 = vpop.f32.mrf.mxu0
    %1599 = vdwg.mxu0
    %v1601 = vrot.slane %v1522, 1
    %v1602 = vrot.slane %v1522, 2
    %v1605 = vadd.f32 %v197, %v1601
    %v1606 = vadd.f32 %v198, %v1602
    %v1607 = vxor.u32 %v1605, 2147483648
    %v1608 = vxor.u32 %v1606, 2147483648
    %v1609 = vmul.f32 %v1607, 1.442695
    %v1610 = vpow.pop %v1609
    %v1611 = vmul.f32 %v1608, 1.442695
    %v1612 = vpow.pop %v1611
    %v1613 = vadd.f32 %v1610, 1.0
    %v1614 = vadd.f32 %v1612, 1.0
    %v1615 = vrcp.pop %v1613
    %v1616 = vmul.f32 1.0, %v1615
    %v1617 = vrcp.pop %v1614
    %v1618 = vmul.f32 1.0, %v1617
    %v1619 = vtanh.pop %v1605
    %v1620 = vtanh.pop %v1606
    %v1623 = vrot.slane %v1458, 7
    %v1624 = vrot.slane %v1459, 7
    %v1627 = vmul.f32 %v1616, %v1623
    %v1628 = vmul.f32 %v1618, %v1624
    %1631 = vrot.lane.b32.xlu0 %v1619, 64
    %v1632 = vpop.permute.xlu0 %1631
    %1633 = vrot.lane.b32.xlu0 %v1620, 64
    %v1634 = vpop.permute.xlu0 %1633
    %v1637 = vmul.f32 %v1616, %v1632
    %v1638 = vmul.f32 %v1618, %v1634
    %1641 = vrot.lane.b32.xlu0 %v1637, 32
    %v1642 = vpop.permute.xlu0 %1641
    %1643 = vrot.lane.b32.xlu0 %v1638, 32
    %v1644 = vpop.permute.xlu0 %1643
    %v1647 = vadd.f32 %v1627, %v1642
    %v1648 = vadd.f32 %v1628, %v1644
    %v1649 = vtanh.pop %v1647
    %v1650 = vtanh.pop %v1648
    %1653 = vrot.lane.b32.xlu0 %v1649, 64
    %v1654 = vpop.permute.xlu0 %1653
    %1655 = vrot.lane.b32.xlu0 %v1650, 64
    %v1656 = vpop.permute.xlu0 %1655
    %v1659 = vmul.f32 %v1616, %v1654
    %v1660 = vmul.f32 %v1618, %v1656
    %v1661 = vpack.c.bf16 %v1659, %v1659
    %v1662 = vpack.c.bf16 %v1660, %v1660
    %v1665 = vunpack.c.l.b16 %v1661
    %v1666 = vunpack.c.l.b16 %v1662
    %v1667 = vrot.slane %v1665, 7
    %v1668 = vrot.slane %v1666, 6
    %v1669 = vsel %vm327, %v1668, %v1667
    %v1670 = vpack.c.b16 %v1669, %v1669
    %1671 = vrot.lane.b32.xlu0 %v1670, 32
    %v1672 = vpop.permute.xlu0 %1671
    %v1674 = vsel %vm226, %v1672, 0
    %1676 = vmatprep.subr.bf16.mxu0 0
    %1677 = vmatpush1.bf16.msra.mxu0 0
    %1678 = vmatprep.subr.bf16.mxu0 0
    %1679 = vmatpush1.bf16.msra.mxu0 0
    %1680 = vmatprep.subr.bf16.mxu0 0
    %1681 = vmatpush1.bf16.msra.mxu0 0
    %1682 = vmatprep.subr.bf16.mxu0 0
    %1683 = vmatpush1.bf16.msra.mxu0 0
    %1684 = vmatprep.subr.bf16.mxu0 0
    %1685 = vmatpush1.bf16.msra.mxu0 0
    %1686 = vmatprep.subr.bf16.mxu0 0
    %1687 = vmatpush1.bf16.msra.mxu0 0
    %1688 = vmatprep.subr.bf16.mxu0 %v347
    %1689 = vmatpush1.bf16.msra.mxu0 %v346
    %1690 = vmatprep.subr.bf16.mxu0 %v345
    %1691 = vmatpush1.bf16.msra.mxu0 %v344
    %1692 = vmatprep.subr.bf16.mxu0 0
    %1693 = vmatpush2.bf16.msra.mxu0 0
    %1694 = vmatprep.subr.bf16.mxu0 0
    %1695 = vmatpush2.bf16.msra.mxu0 0
    %1696 = vmatprep.subr.bf16.mxu0 0
    %1697 = vmatpush2.bf16.msra.mxu0 0
    %1698 = vmatprep.subr.bf16.mxu0 0
    %1699 = vmatpush2.bf16.msra.mxu0 0
    %1700 = vmatprep.subr.bf16.mxu0 0
    %1701 = vmatpush2.bf16.msra.mxu0 0
    %1702 = vmatprep.subr.bf16.mxu0 0
    %1703 = vmatpush2.bf16.msra.mxu0 0
    %1704 = vmatprep.subr.bf16.mxu0 0
    %1705 = vmatpush2.bf16.msra.mxu0 0
    %1706 = vmatprep.subr.bf16.mxu0 0
    %1707 = vmatpush2.bf16.msra.mxu0 0
    %1708 = vmatprep.mubr.bf16.mxu0 0
    %1709 = vmatmul.mubr.bf16.gmra.mxu0 %v1674
    %v1710 = vpop.f32.mrf.mxu0
    %v1711 = vpop.f32.mrf.mxu0
    %v1712 = vadd.f32 0.0, %v1711
    %v1713 = vpop.f32.mrf.mxu0
    %v1714 = vpop.f32.mrf.mxu0
    %1715 = vdwg.mxu0
    %v1716 = vadd.f32 %v1712, %v1595
    %v1717 = vxor.u32 %v1716, 2147483648
    %v1718 = vmul.f32 %v1717, 1.442695
    %v1719 = vpow.pop %v1718
    %v1720 = vadd.f32 %v1719, 1.0
    %v1721 = vrcp.pop %v1720
    %v1722 = vmul.f32 1.0, %v1721
    %v1723 = vtanh.pop %v1716
    %v1724 = vmul.f32 %v1722, %v1546
    %1726 = vrot.lane.b32.xlu0 %v1723, 64
    %v1727 = vpop.permute.xlu0 %1726
    %v1729 = vmul.f32 %v1722, %v1727
    %1731 = vrot.lane.b32.xlu0 %v1729, 32
    %v1732 = vpop.permute.xlu0 %1731
    %v1734 = vadd.f32 %v1724, %v1732
    %v1735 = vtanh.pop %v1734
    %1737 = vrot.lane.b32.xlu0 %v1735, 64
    %v1738 = vpop.permute.xlu0 %1737
    %v1740 = vmul.f32 %v1722, %v1738
    %v1741 = vld [vmem:[%s9] sm:$0xff]
    %v1742 = vld [vmem:[%s9 + $0x8] sm:$0xff]
    %v1743 = vld [vmem:[%s9 + $0x10] sm:$0xff]
    %v1744 = vld [vmem:[%s9 + $0x18] sm:$0xff]
    %v1745 = vld [vmem:[%s9 + $0x20] sm:$0xff]
    %v1746 = vld [vmem:[%s9 + $0x28] sm:$0xff]
    %v1747 = vld [vmem:[%s9 + $0x30] sm:$0xff]
    %v1748 = vld [vmem:[%s9 + $0x38] sm:$0xff]
    %v1749 = vld [vmem:[%s10] sm:$0x3]
    %v1751 = vlaneseq
    %v1752 = vshrl.u32 %v1751, 7
    %v1753 = vsub.s32 0, %v1752
    %v1754 = vrot.slane %v1749, %v1753
    %v1755 = vlaneseq
    %v1756 = vshrl.u32 %v1755, 7
    %v1757 = vsub.s32 1, %v1756
    %v1758 = vrot.slane %v1749, %v1757
    %1762 = vrot.lane.b32.xlu0 %v1740, 32
    %v1763 = vpop.permute.xlu0 %1762
    %v1764 = vsel %vm226, %v1763, 0
    %1766 = vmatprep.subr.mxu0 0.0
    %1767 = vmatpush1.msra.mxu0 0.0
    %1768 = vmatprep.subr.mxu0 0.0
    %1769 = vmatpush1.msra.mxu0 0.0
    %1770 = vmatprep.subr.mxu0 0.0
    %1771 = vmatpush1.msra.mxu0 0.0
    %1772 = vmatprep.subr.mxu0 0.0
    %1773 = vmatpush1.msra.mxu0 0.0
    %1774 = vmatprep.subr.mxu0 0.0
    %1775 = vmatpush1.msra.mxu0 0.0
    %1776 = vmatprep.subr.mxu0 0.0
    %1777 = vmatpush1.msra.mxu0 0.0
    %1778 = vmatprep.subr.mxu0 0.0
    %1779 = vmatpush1.msra.mxu0 0.0
    %1780 = vmatprep.subr.mxu0 0.0
    %1781 = vmatpush1.msra.mxu0 0.0
    %1782 = vmatprep.subr.mxu0 0.0
    %1783 = vmatpush1.msra.mxu0 0.0
    %1784 = vmatprep.subr.mxu0 0.0
    %1785 = vmatpush1.msra.mxu0 0.0
    %1786 = vmatprep.subr.mxu0 0.0
    %1787 = vmatpush1.msra.mxu0 0.0
    %1788 = vmatprep.subr.mxu0 0.0
    %1789 = vmatpush1.msra.mxu0 0.0
    %1790 = vmatprep.subr.mxu0 %v1748
    %1791 = vmatpush1.msra.mxu0 %v1747
    %1792 = vmatprep.subr.mxu0 %v1746
    %1793 = vmatpush1.msra.mxu0 %v1745
    %1794 = vmatprep.subr.mxu0 %v1744
    %1795 = vmatpush1.msra.mxu0 %v1743
    %1796 = vmatprep.subr.mxu0 %v1742
    %1797 = vmatpush1.msra.mxu0 %v1741
    %1798 = vmatprep.subr.mxu0 0.0
    %1799 = vmatpush2.msra.mxu0 0.0
    %1800 = vmatprep.subr.mxu0 0.0
    %1801 = vmatpush2.msra.mxu0 0.0
    %1802 = vmatprep.subr.mxu0 0.0
    %1803 = vmatpush2.msra.mxu0 0.0
    %1804 = vmatprep.subr.mxu0 0.0
    %1805 = vmatpush2.msra.mxu0 0.0
    %1806 = vmatprep.subr.mxu0 0.0
    %1807 = vmatpush2.msra.mxu0 0.0
    %1808 = vmatprep.subr.mxu0 0.0
    %1809 = vmatpush2.msra.mxu0 0.0
    %1810 = vmatprep.subr.mxu0 0.0
    %1811 = vmatpush2.msra.mxu0 0.0
    %1812 = vmatprep.subr.mxu0 0.0
    %1813 = vmatpush2.msra.mxu0 0.0
    %1814 = vmatprep.subr.mxu0 0.0
    %1815 = vmatpush2.msra.mxu0 0.0
    %1816 = vmatprep.subr.mxu0 0.0
    %1817 = vmatpush2.msra.mxu0 0.0
    %1818 = vmatprep.subr.mxu0 0.0
    %1819 = vmatpush2.msra.mxu0 0.0
    %1820 = vmatprep.subr.mxu0 0.0
    %1821 = vmatpush2.msra.mxu0 0.0
    %1822 = vmatprep.subr.mxu0 0.0
    %1823 = vmatpush2.msra.mxu0 0.0
    %1824 = vmatprep.subr.mxu0 0.0
    %1825 = vmatpush2.msra.mxu0 0.0
    %1826 = vmatprep.subr.mxu0 0.0
    %1827 = vmatpush2.msra.mxu0 0.0
    %1828 = vmatprep.subr.mxu0 0.0
    %1829 = vmatpush2.msra.mxu0 0.0
    %1830 = vmatprep.mubr.f32.mxu0 0.0
    %1831 = vmatmul.mubr.f32.gmra.mxu0 %v1764
    %v1832 = vpop.f32.mrf.mxu0
    %v1833 = vadd.f32 %v1754, %v1832
    %v1834 = vpop.f32.mrf.mxu0
    %v1835 = vadd.f32 %v1758, %v1834
    %1836 = vdwg.mxu0
    %v1839 = vcombine.low %v1833, %v1835
    %v1841 = vunpack.c.l.s4 1983009808
    %v1842 = vunpack.c.0.s8 %v1841
    %v1843 = vlaneseq
    %v1844 = vshrl.u32 %v1843, 7
    %v1845 = vsub.s32 %v1842, %v1844
    %v1846 = vrot.slane %v1839, %v1845
    %vm1848 = vcmask 1041408
    %vm1849 = vcmask 322562
    %vm1850 = vmor %vm1849, %vm1848
    %1851 = vst.msk [vmem:[#allocation11] sm:$0xf] %vm1850, %v1846
    %v1852 = vld [vmem:[#allocation8] sm:$0xff]
    %v1853 = vld [vmem:[#allocation8 + $0x8] sm:$0xff]
    %v1854 = vld [vmem:[#allocation8 + $0x10] sm:$0xff]
    %v1855 = vld [vmem:[#allocation8 + $0x18] sm:$0xff]
    %v1856 = vld [vmem:[#allocation8 + $0x20] sm:$0xff]
    %v1857 = vld [vmem:[#allocation8 + $0x28] sm:$0xff]
    %v1858 = vld [vmem:[#allocation8 + $0x30] sm:$0xff]
    %v1859 = vld [vmem:[#allocation8 + $0x38] sm:$0xff]
    %v1860 = vld [vmem:[#allocation10] sm:$0x3]
    %v1862 = vlaneseq
    %v1863 = vshrl.u32 %v1862, 7
    %v1864 = vsub.s32 0, %v1863
    %v1865 = vrot.slane %v1860, %v1864
    %v1866 = vlaneseq
    %v1867 = vshrl.u32 %v1866, 7
    %v1868 = vsub.s32 1, %v1867
    %v1869 = vrot.slane %v1860, %v1868
    %1872 = vmatprep.subr.mxu0 0.0
    %1873 = vmatpush1.msra.mxu0 0.0
    %1874 = vmatprep.subr.mxu0 0.0
    %1875 = vmatpush1.msra.mxu0 0.0
    %1876 = vmatprep.subr.mxu0 0.0
    %1877 = vmatpush1.msra.mxu0 0.0
    %1878 = vmatprep.subr.mxu0 0.0
    %1879 = vmatpush1.msra.mxu0 0.0
    %1880 = vmatprep.subr.mxu0 0.0
    %1881 = vmatpush1.msra.mxu0 0.0
    %1882 = vmatprep.subr.mxu0 0.0
    %1883 = vmatpush1.msra.mxu0 0.0
    %1884 = vmatprep.subr.mxu0 0.0
    %1885 = vmatpush1.msra.mxu0 0.0
    %1886 = vmatprep.subr.mxu0 0.0
    %1887 = vmatpush1.msra.mxu0 0.0
    %1888 = vmatprep.subr.mxu0 0.0
    %1889 = vmatpush1.msra.mxu0 0.0
    %1890 = vmatprep.subr.mxu0 0.0
    %1891 = vmatpush1.msra.mxu0 0.0
    %1892 = vmatprep.subr.mxu0 0.0
    %1893 = vmatpush1.msra.mxu0 0.0
    %1894 = vmatprep.subr.mxu0 0.0
    %1895 = vmatpush1.msra.mxu0 0.0
    %1896 = vmatprep.subr.mxu0 %v1859
    %1897 = vmatpush1.msra.mxu0 %v1858
    %1898 = vmatprep.subr.mxu0 %v1857
    %1899 = vmatpush1.msra.mxu0 %v1856
    %1900 = vmatprep.subr.mxu0 %v1855
    %1901 = vmatpush1.msra.mxu0 %v1854
    %1902 = vmatprep.subr.mxu0 %v1853
    %1903 = vmatpush1.msra.mxu0 %v1852
    %1904 = vmatprep.subr.mxu0 0.0
    %1905 = vmatpush2.msra.mxu0 0.0
    %1906 = vmatprep.subr.mxu0 0.0
    %1907 = vmatpush2.msra.mxu0 0.0
    %1908 = vmatprep.subr.mxu0 0.0
    %1909 = vmatpush2.msra.mxu0 0.0
    %1910 = vmatprep.subr.mxu0 0.0
    %1911 = vmatpush2.msra.mxu0 0.0
    %1912 = vmatprep.subr.mxu0 0.0
    %1913 = vmatpush2.msra.mxu0 0.0
    %1914 = vmatprep.subr.mxu0 0.0
    %1915 = vmatpush2.msra.mxu0 0.0
    %1916 = vmatprep.subr.mxu0 0.0
    %1917 = vmatpush2.msra.mxu0 0.0
    %1918 = vmatprep.subr.mxu0 0.0
    %1919 = vmatpush2.msra.mxu0 0.0
    %1920 = vmatprep.subr.mxu0 0.0
    %1921 = vmatpush2.msra.mxu0 0.0
    %1922 = vmatprep.subr.mxu0 0.0
    %1923 = vmatpush2.msra.mxu0 0.0
    %1924 = vmatprep.subr.mxu0 0.0
    %1925 = vmatpush2.msra.mxu0 0.0
    %1926 = vmatprep.subr.mxu0 0.0
    %1927 = vmatpush2.msra.mxu0 0.0
    %1928 = vmatprep.subr.mxu0 0.0
    %1929 = vmatpush2.msra.mxu0 0.0
    %1930 = vmatprep.subr.mxu0 0.0
    %1931 = vmatpush2.msra.mxu0 0.0
    %1932 = vmatprep.subr.mxu0 0.0
    %1933 = vmatpush2.msra.mxu0 0.0
    %1934 = vmatprep.subr.mxu0 0.0
    %1935 = vmatpush2.msra.mxu0 0.0
    %1936 = vmatprep.mubr.f32.mxu0 0.0
    %1937 = vmatmul.mubr.f32.gmra.mxu0 %v1764
    %v1938 = vpop.f32.mrf.mxu0
    %v1939 = vadd.f32 %v1865, %v1938
    %v1940 = vpop.f32.mrf.mxu0
    %v1941 = vadd.f32 %v1869, %v1940
    %1942 = vdwg.mxu0
    %v1945 = vcombine.low %v1939, %v1941
    %v1947 = vunpack.c.l.s4 1983009808
    %v1948 = vunpack.c.0.s8 %v1947
    %v1949 = vlaneseq
    %v1950 = vshrl.u32 %v1949, 7
    %v1951 = vsub.s32 %v1948, %v1950
    %v1952 = vrot.slane %v1945, %v1951
    %1954 = vst.msk [vmem:[#allocation12] sm:$0xf] %vm1850, %v1952
    // Predicated region
    $region74: #{week_forecast_prob_lstm.1} parent=1 // pred_check
      _
    $region75: #{week_forecast_prob_lstm.1} parent=1 // pred_check_branch
      %1956 = sbr.rel (0) target = $region77
    $region76: #{week_forecast_prob_lstm.1} parent=1 // pred_region
      %s1958 = ssub.s32 64, 64
      %1959 = vsyncadd [#allocation4], %s1958
      %s1961 = sshll.u32 [#allocation11], 4
      %s1962 = int_to_ptr.vmem [resolvable:$true] %s1961
      %1964 = dma.vmem_to_hbm [thread:$0]  %s1962, 64, %s13, [#allocation4]
    $region77: #{week_forecast_prob_lstm.1} parent=1 // pred_fallthru
      _
    // Predicated region
    $region78: #{week_forecast_prob_lstm.1} parent=1 // pred_check
      _
    $region79: #{week_forecast_prob_lstm.1} parent=1 // pred_check_branch
      %1966 = sbr.rel (0) target = $region81
    $region80: #{week_forecast_prob_lstm.1} parent=1 // pred_region
      %s1968 = ssub.s32 64, 64
      %1969 = vsyncadd [#allocation13], %s1968
      %s1971 = sshll.u32 [#allocation12], 4
      %s1972 = int_to_ptr.vmem [resolvable:$true] %s1971
      %1974 = dma.vmem_to_hbm [thread:$0]  %s1972, 64, %s14, [#allocation13]
    $region81: #{week_forecast_prob_lstm.1} parent=1 // pred_fallthru
      _
    // Predicated region
    $region82: #{week_forecast_prob_lstm.1} parent=1 // pred_check
      _
    $region83: #{week_forecast_prob_lstm.1} parent=1 // pred_check_branch
      %1976 = sbr.rel (0) target = $region85
    $region84: #{week_forecast_prob_lstm.1} parent=1 // pred_region
      %1977 = dma.done [#allocation4], 64
    $region85: #{week_forecast_prob_lstm.1} parent=1 // pred_fallthru
      _
    // Predicated region
    $region86: #{week_forecast_prob_lstm.1} parent=1 // pred_check
      _
    $region87: #{week_forecast_prob_lstm.1} parent=1 // pred_check_branch
      %1979 = sbr.rel (0) target = $region89
    $region88: #{week_forecast_prob_lstm.1} parent=1 // pred_region
      %1980 = dma.done [#allocation13], 64
    $region89: #{week_forecast_prob_lstm.1} parent=1 // pred_fallthru
      _
    %1981 = vsyncpa [#allocation3], 1
    %1982 = vsyncpa [#allocation6], 1
    %1983 = vsyncpa [#allocation9], 1
    %1984 = vsyncpa [#allocation4], 1
    %1985 = vsyncpa [#allocation13], 1

</llo_original>
